<compile_context>
chip_gen: v6e
topology: v6e:2x2x1
jax: 0.10.0
libtpu: 0.0.40
codegen_flags: <defaults>
</compile_context>

<pallas_src>
import math

import jax
import jax.numpy as jnp
from jax import lax
from jax.experimental import pallas as pl
from jax.experimental.pallas import tpu as pltpu

# ---- model sizes -------------------------------------------------------------
B = 2               # batch
S = 8               # sequence length
BS = B * S
H = 32              # hidden size (768 in the real model)
NUM_HEADS = 4
HEAD_DIM = H // NUM_HEADS
FF = 4 * H          # FFN intermediate
C = 7               # num_classes
C_PAD = 128         # lane-dense classifier output width (sliced to C in the wrapper)
VOCAB = 100
NUM_LAYERS = 2
DR_RATE = 0.5       # dropout prob (training-mode semantics, deterministic key)
LN_EPS = 1e-12
NEG_INF = -1e9
QKV_W = 3 * H       # fused QKV output width


# ---- helpers (usable both in-kernel and in glue) ------------------------------
def _layernorm(x, g, b, eps=LN_EPS):
    mu = jnp.mean(x, axis=-1, keepdims=True)
    var = jnp.mean((x - mu) ** 2, axis=-1, keepdims=True)
    return (x - mu) * lax.rsqrt(var + eps) * g + b


def _gelu(x):
    # TODO(synk): PyTorch nn.GELU default is erf; tanh approximation differs by ~1e-3.
    return 0.5 * x * (1.0 + jnp.tanh(0.7978845608028654 * (x + 0.044715 * x * x * x)))


# ---- fused kernel: both encoder layers + pooler + dropout + classifier --------
def fused_bert_kernel(
    x_ref,        # (BS, H)     f32   embeddings after embedding-LayerNorm
    bias_ref,     # (BS, BS)    f32   precomputed additive attention bias
    drop_ref,     # (B, H)      f32   dropout keep-mask, pre-scaled by 1/(1-p)
    wqkv_ref,     # (L, H, 3H)  bf16  fused Q|K|V, head-major cols, Q pre-scaled
    wo_ref,       # (L, H, H)   bf16
    w1_ref,       # (L, H, FF)  bf16
    w2_ref,       # (L, FF, H)  bf16
    vecs_ref,     # (L, 8, 128) f32   packed [bqkv, bo, g1, be1, b1, b2, g2, be2]
    wp_ref,       # (H, H)      bf16  pooler
    wc_ref,       # (H, C_PAD)  bf16  classifier (lane-padded)
    hb_ref,       # (2, C_PAD)  f32   row0 = bp (pad), row1 = bc (pad)
    out_ref,      # (B, C_PAD)  f32
    x_sc,         # scratch (BS, H) f32 (for the strided CLS read)
):
    bf16 = jnp.bfloat16
    bias = bias_ref[...]          # layer-invariant, loaded once
    x = x_ref[...]                # (BS, H) f32

    # ---- encoder layers, statically unrolled (single trace window) -----------
    for l in range(NUM_LAYERS):
        vec = vecs_ref[l]                                     # (8, 128) f32
        xb = x.astype(bf16)

        # one fused QKV matmul; per-head [q|k|v] blocks of 3*HEAD_DIM lanes
        qkv = jnp.dot(xb, wqkv_ref[l],
                      preferred_element_type=jnp.float32) + vec[0:1, :QKV_W]

        ctx_heads = []
        for h in range(NUM_HEADS):
            base = 3 * HEAD_DIM * h
            q_h = qkv[:, base:base + HEAD_DIM].astype(bf16)               # (BS, HD)
            k_h = qkv[:, base + HEAD_DIM:base + 2 * HEAD_DIM].astype(bf16)
            v_h = qkv[:, base + 2 * HEAD_DIM:base + 3 * HEAD_DIM].astype(bf16)

            # scale already folded into Wq/bq in the wrapper
            s = lax.dot_general(q_h, k_h, (((1,), (1,)), ((), ())),
                                preferred_element_type=jnp.float32)       # (BS, BS)
            s = s + bias
            s = s - jnp.max(s, axis=-1, keepdims=True)
            p = jnp.exp(s)
            p = p * pl.reciprocal(jnp.sum(p, axis=-1, keepdims=True), approx=True)

            ctx_heads.append(jnp.dot(p.astype(bf16), v_h,
                                     preferred_element_type=jnp.float32))  # (BS, HD)

        ctx = jnp.concatenate(ctx_heads, axis=-1)                          # (BS, H)
        attn = jnp.dot(ctx.astype(bf16), wo_ref[l],
                       preferred_element_type=jnp.float32) + vec[1:2, :H]

        h1 = _layernorm(x + attn, vec[2:3, :H], vec[3:4, :H])

        ff = jnp.dot(h1.astype(bf16), w1_ref[l],
                     preferred_element_type=jnp.float32) + vec[4:5, :FF]
        ff = _gelu(ff)
        ff = jnp.dot(ff.astype(bf16), w2_ref[l],
                     preferred_element_type=jnp.float32) + vec[5:6, :H]

        x = _layernorm(h1 + ff, vec[6:7, :H], vec[7:8, :H])

    # ---- pooler(tanh) + dropout + classifier ----------------------------------
    x_sc[...] = x
    cls = x_sc[pl.ds(0, B, stride=S), :]                   # CLS rows 0, S, ... -> (B, H)
    hb = hb_ref[...]
    pooled = jnp.tanh(jnp.dot(cls.astype(bf16), wp_ref[...],
                              preferred_element_type=jnp.float32) + hb[0:1, :H])
    dropped = pooled * drop_ref[...]
    out_ref[...] = (jnp.dot(dropped.astype(bf16), wc_ref[...],
                            preferred_element_type=jnp.float32) + hb[1:2, :])


# ---- parameter init (deterministic, in-script) --------------------------------
def init_params(key):
    keys = iter(jax.random.split(key, 64))

    def nrm(shape):
        return jax.random.normal(next(keys), shape, jnp.float32) * 0.02

    params = {
        "tok_emb": nrm((VOCAB, H)),
        "seg_emb": nrm((2, H)),
        "pos_emb": nrm((S, H)),
        "emb_g": jnp.ones((1, H), jnp.float32),
        "emb_b": jnp.zeros((1, H), jnp.float32),
        "wp": nrm((H, H)), "bp": jnp.zeros((1, H), jnp.float32),
        "wc": nrm((H, C)), "bc": jnp.zeros((1, C), jnp.float32),
        "layers": [],
    }
    for _ in range(NUM_LAYERS):
        params["layers"].append({
            "wq": nrm((H, H)), "bq": jnp.zeros((1, H), jnp.float32),
            "wk": nrm((H, H)), "bk": jnp.zeros((1, H), jnp.float32),
            "wv": nrm((H, H)), "bv": jnp.zeros((1, H), jnp.float32),
            "wo": nrm((H, H)), "bo": jnp.zeros((1, H), jnp.float32),
            "g1": jnp.ones((1, H), jnp.float32), "be1": jnp.zeros((1, H), jnp.float32),
            "w1": nrm((H, FF)), "b1": jnp.zeros((1, FF), jnp.float32),
            "w2": nrm((FF, H)), "b2": jnp.zeros((1, H), jnp.float32),
            "g2": jnp.ones((1, H), jnp.float32), "be2": jnp.zeros((1, H), jnp.float32),
        })
    return params


# ---- full forward (== BERTClassifier.forward) ----------------------------------
def bert_classifier_forward(token_ids, valid_length, segment_ids, params, dropout_rng):
    bf16 = jnp.bfloat16

    # glue: embedding gather + embedding layernorm (not the hot path)
    x = (params["tok_emb"][token_ids]
         + params["seg_emb"][segment_ids]
         + params["pos_emb"][None])
    x = _layernorm(x, params["emb_g"], params["emb_b"]).astype(jnp.float32)
    x2d = x.reshape(BS, H)

    # layer-invariant attention bias: gen_attention_mask semantics (key pos < valid_length)
    # plus block-diagonal batch masking, precomputed once in the wrapper.
    key_valid = (jnp.arange(S, dtype=jnp.int32)[None, :]
                 < valid_length.astype(jnp.int32)[:, None]).reshape(1, BS)
    row_b = jnp.arange(BS, dtype=jnp.int32)[:, None] // S
    col_b = jnp.arange(BS, dtype=jnp.int32)[None, :] // S
    attn_bias = jnp.where((row_b == col_b) & key_valid, 0.0, NEG_INF).astype(jnp.float32)

    # dropout keep-mask (training-mode semantics, deterministic key), pre-scaled.
    # TODO(synk): PyTorch eval() skips dropout; pass jnp.ones((B, H)) to disable.
    keep = jax.random.bernoulli(dropout_rng, 1.0 - DR_RATE, (B, H))
    drop_mask = keep.astype(jnp.float32) / (1.0 - DR_RATE)

    layers = params["layers"]
    scale = 1.0 / math.sqrt(HEAD_DIM)

    # fuse Wq|Wk|Wv head-major, fold 1/sqrt(HD) into the Q columns / bias
    def fuse_qkv_w(ly):
        wq = (ly["wq"] * scale).reshape(H, NUM_HEADS, HEAD_DIM)
        wk = ly["wk"].reshape(H, NUM_HEADS, HEAD_DIM)
        wv = ly["wv"].reshape(H, NUM_HEADS, HEAD_DIM)
        return jnp.concatenate([wq, wk, wv], axis=-1).reshape(H, QKV_W)

    def fuse_qkv_b(ly):
        bq = (ly["bq"] * scale).reshape(NUM_HEADS, HEAD_DIM)
        bk = ly["bk"].reshape(NUM_HEADS, HEAD_DIM)
        bv = ly["bv"].reshape(NUM_HEADS, HEAD_DIM)
        return jnp.concatenate([bq, bk, bv], axis=-1).reshape(QKV_W)

    # pack the 8 tiny per-layer f32 vectors into one (8, 128) tile per layer
    def pack_vecs(ly):
        rows = [fuse_qkv_b(ly), ly["bo"].reshape(-1),
                ly["g1"].reshape(-1), ly["be1"].reshape(-1),
                ly["b1"].reshape(-1), ly["b2"].reshape(-1),
                ly["g2"].reshape(-1), ly["be2"].reshape(-1)]
        out = jnp.zeros((8, 128), jnp.float32)
        for i, r in enumerate(rows):
            out = out.at[i, :r.shape[0]].set(r)
        return out

    wqkv = jnp.stack([fuse_qkv_w(ly) for ly in layers]).astype(bf16)   # (L, H, 3H)
    wo = jnp.stack([ly["wo"] for ly in layers]).astype(bf16)           # (L, H, H)
    w1 = jnp.stack([ly["w1"] for ly in layers]).astype(bf16)           # (L, H, FF)
    w2 = jnp.stack([ly["w2"] for ly in layers]).astype(bf16)           # (L, FF, H)
    vecs = jnp.stack([pack_vecs(ly) for ly in layers])                 # (L, 8, 128) f32

    # head weights: classifier padded to a lane-dense 128-wide output slab
    wp = params["wp"].astype(bf16)
    wc_pad = jnp.zeros((H, C_PAD), jnp.float32).at[:, :C].set(params["wc"]).astype(bf16)
    hb = (jnp.zeros((2, C_PAD), jnp.float32)
          .at[0, :H].set(params["bp"].reshape(-1))
          .at[1, :C].set(params["bc"].reshape(-1)))

    operands = [x2d, attn_bias, drop_mask, wqkv, wo, w1, w2, vecs, wp, wc_pad, hb]
    vmem = pl.BlockSpec(memory_space=pltpu.MemorySpace.VMEM)

    logits_pad = pl.pallas_call(
        fused_bert_kernel,
        out_shape=jax.ShapeDtypeStruct((B, C_PAD), jnp.float32),
        in_specs=[vmem] * len(operands),
        out_specs=vmem,
        scratch_shapes=[pltpu.VMEM((BS, H), jnp.float32)],
    )(*operands)

    return logits_pad[:, :C]


if __name__ == "__main__":
    key = jax.random.PRNGKey(0)
    pkey, tkey, dkey = jax.random.split(key, 3)

    params = init_params(pkey)
    token_ids = jax.random.randint(tkey, (B, S), 0, VOCAB, dtype=jnp.int32)
    valid_length = jnp.array([8, 5], dtype=jnp.int32)
    segment_ids = jnp.zeros((B, S), dtype=jnp.int32)

    logits = bert_classifier_forward(token_ids, valid_length, segment_ids, params, dkey)
    jax.block_until_ready(logits)
    assert logits.shape == (B, C) and logits.dtype == jnp.float32
    print("KERNEL_OK")
</pallas_src>

<mosaic_0001>
module attributes {stable_mosaic.version = 11 : i64} {
  func.func @fused_bert_kernel(%arg0: memref<16x32xf32, #tpu.memory_space<vmem>>, %arg1: memref<16x16xf32, #tpu.memory_space<vmem>>, %arg2: memref<2x32xf32, #tpu.memory_space<vmem>>, %arg3: memref<2x32x96xbf16, #tpu.memory_space<vmem>>, %arg4: memref<2x32x32xbf16, #tpu.memory_space<vmem>>, %arg5: memref<2x32x128xbf16, #tpu.memory_space<vmem>>, %arg6: memref<2x128x32xbf16, #tpu.memory_space<vmem>>, %arg7: memref<2x8x128xf32, #tpu.memory_space<vmem>>, %arg8: memref<32x32xbf16, #tpu.memory_space<vmem>>, %arg9: memref<32x128xbf16, #tpu.memory_space<vmem>>, %arg10: memref<2x128xf32, #tpu.memory_space<vmem>>, %arg11: memref<2x128xf32, #tpu.memory_space<vmem>>, %arg12: memref<16x32xf32, #tpu.memory_space<vmem>>) attributes {dimension_semantics = [], scalar_prefetch = 0 : i64, scratch_operands = 1 : i64, tpu.core_type = #tpu.core_type<tc>} {
    %c0 = arith.constant 0 : index
    %c0_0 = arith.constant 0 : index
    %0 = vector.load %arg1[%c0, %c0_0] : memref<16x16xf32, #tpu.memory_space<vmem>>, vector<16x16xf32>
    %c0_1 = arith.constant 0 : index
    %c0_2 = arith.constant 0 : index
    %1 = vector.load %arg0[%c0_1, %c0_2] : memref<16x32xf32, #tpu.memory_space<vmem>>, vector<16x32xf32>
    %c0_3 = arith.constant 0 : index
    %c0_4 = arith.constant 0 : index
    %c0_5 = arith.constant 0 : index
    %2 = vector.load %arg7[%c0_3, %c0_4, %c0_5] : memref<2x8x128xf32, #tpu.memory_space<vmem>>, vector<1x8x128xf32>
    %3 = vector.shape_cast %2 : vector<1x8x128xf32> to vector<8x128xf32>
    %4 = arith.truncf %1 : vector<16x32xf32> to vector<16x32xbf16>
    %c0_6 = arith.constant 0 : index
    %c0_7 = arith.constant 0 : index
    %c0_8 = arith.constant 0 : index
    %5 = vector.load %arg3[%c0_6, %c0_7, %c0_8] : memref<2x32x96xbf16, #tpu.memory_space<vmem>>, vector<1x32x96xbf16>
    %6 = vector.shape_cast %5 : vector<1x32x96xbf16> to vector<32x96xbf16>
    %cst = arith.constant dense<0.000000e+00> : vector<16x96xf32>
    %7 = tpu.matmul %4, %6, %cst {dimension_numbers = #tpu.dot_dimension_numbers<[1], [0], [0], [1], [0, 0, 1, 1], [], []>} : vector<16x32xbf16>, vector<32x96xbf16>, vector<16x96xf32> -> vector<16x96xf32>
    %8 = vector.extract_strided_slice %3 {offsets = [0, 0], sizes = [1, 96], strides = [1, 1]} : vector<8x128xf32> to vector<1x96xf32>
    %9 = vector.broadcast %8 : vector<1x96xf32> to vector<16x96xf32>
    %10 = arith.addf %7, %9 : vector<16x96xf32>
    %11 = vector.extract_strided_slice %10 {offsets = [0, 0], sizes = [16, 8], strides = [1, 1]} : vector<16x96xf32> to vector<16x8xf32>
    %12 = arith.truncf %11 : vector<16x8xf32> to vector<16x8xbf16>
    %13 = vector.extract_strided_slice %10 {offsets = [0, 8], sizes = [16, 8], strides = [1, 1]} : vector<16x96xf32> to vector<16x8xf32>
    %14 = arith.truncf %13 : vector<16x8xf32> to vector<16x8xbf16>
    %15 = vector.extract_strided_slice %10 {offsets = [0, 16], sizes = [16, 8], strides = [1, 1]} : vector<16x96xf32> to vector<16x8xf32>
    %16 = arith.truncf %15 : vector<16x8xf32> to vector<16x8xbf16>
    %cst_9 = arith.constant dense<0.000000e+00> : vector<16x16xf32>
    %17 = tpu.matmul %12, %14, %cst_9 {dimension_numbers = #tpu.dot_dimension_numbers<[1], [1], [0], [0], [0, 0, 1, 0], [], []>} : vector<16x8xbf16>, vector<16x8xbf16>, vector<16x16xf32> -> vector<16x16xf32>
    %18 = arith.addf %17, %0 : vector<16x16xf32>
    %cst_10 = arith.constant dense<0xFF800000> : vector<16xf32>
    %19 = vector.multi_reduction <maximumf>, %18, %cst_10 [1] : vector<16x16xf32> to vector<16xf32>
    %20 = vector.shape_cast %19 : vector<16xf32> to vector<16x1xf32>
    %21 = vector.broadcast %20 : vector<16x1xf32> to vector<16x16xf32>
    %22 = arith.subf %18, %21 : vector<16x16xf32>
    %23 = math.exp %22 : vector<16x16xf32>
    %cst_11 = arith.constant dense<0.000000e+00> : vector<16xf32>
    %24 = vector.multi_reduction <add>, %23, %cst_11 [1] : vector<16x16xf32> to vector<16xf32>
    %25 = vector.shape_cast %24 : vector<16xf32> to vector<16x1xf32>
    %26 = tpu.reciprocal %25 {approx = true} : vector<16x1xf32> -> vector<16x1xf32>
    %27 = vector.broadcast %26 : vector<16x1xf32> to vector<16x16xf32>
    %28 = arith.mulf %23, %27 : vector<16x16xf32>
    %29 = arith.truncf %28 : vector<16x16xf32> to vector<16x16xbf16>
    %cst_12 = arith.constant dense<0.000000e+00> : vector<16x8xf32>
    %30 = tpu.matmul %29, %16, %cst_12 {dimension_numbers = #tpu.dot_dimension_numbers<[1], [0], [0], [1], [0, 0, 1, 1], [], []>} : vector<16x16xbf16>, vector<16x8xbf16>, vector<16x8xf32> -> vector<16x8xf32>
    %31 = vector.extract_strided_slice %10 {offsets = [0, 24], sizes = [16, 8], strides = [1, 1]} : vector<16x96xf32> to vector<16x8xf32>
    %32 = arith.truncf %31 : vector<16x8xf32> to vector<16x8xbf16>
    %33 = vector.extract_strided_slice %10 {offsets = [0, 32], sizes = [16, 8], strides = [1, 1]} : vector<16x96xf32> to vector<16x8xf32>
    %34 = arith.truncf %33 : vector<16x8xf32> to vector<16x8xbf16>
    %35 = vector.extract_strided_slice %10 {offsets = [0, 40], sizes = [16, 8], strides = [1, 1]} : vector<16x96xf32> to vector<16x8xf32>
    %36 = arith.truncf %35 : vector<16x8xf32> to vector<16x8xbf16>
    %cst_13 = arith.constant dense<0.000000e+00> : vector<16x16xf32>
    %37 = tpu.matmul %32, %34, %cst_13 {dimension_numbers = #tpu.dot_dimension_numbers<[1], [1], [0], [0], [0, 0, 1, 0], [], []>} : vector<16x8xbf16>, vector<16x8xbf16>, vector<16x16xf32> -> vector<16x16xf32>
    %38 = arith.addf %37, %0 : vector<16x16xf32>
    %cst_14 = arith.constant dense<0xFF800000> : vector<16xf32>
    %39 = vector.multi_reduction <maximumf>, %38, %cst_14 [1] : vector<16x16xf32> to vector<16xf32>
    %40 = vector.shape_cast %39 : vector<16xf32> to vector<16x1xf32>
    %41 = vector.broadcast %40 : vector<16x1xf32> to vector<16x16xf32>
    %42 = arith.subf %38, %41 : vector<16x16xf32>
    %43 = math.exp %42 : vector<16x16xf32>
    %cst_15 = arith.constant dense<0.000000e+00> : vector<16xf32>
    %44 = vector.multi_reduction <add>, %43, %cst_15 [1] : vector<16x16xf32> to vector<16xf32>
    %45 = vector.shape_cast %44 : vector<16xf32> to vector<16x1xf32>
    %46 = tpu.reciprocal %45 {approx = true} : vector<16x1xf32> -> vector<16x1xf32>
    %47 = vector.broadcast %46 : vector<16x1xf32> to vector<16x16xf32>
    %48 = arith.mulf %43, %47 : vector<16x16xf32>
    %49 = arith.truncf %48 : vector<16x16xf32> to vector<16x16xbf16>
    %cst_16 = arith.constant dense<0.000000e+00> : vector<16x8xf32>
    %50 = tpu.matmul %49, %36, %cst_16 {dimension_numbers = #tpu.dot_dimension_numbers<[1], [0], [0], [1], [0, 0, 1, 1], [], []>} : vector<16x16xbf16>, vector<16x8xbf16>, vector<16x8xf32> -> vector<16x8xf32>
    %51 = vector.extract_strided_slice %10 {offsets = [0, 48], sizes = [16, 8], strides = [1, 1]} : vector<16x96xf32> to vector<16x8xf32>
    %52 = arith.truncf %51 : vector<16x8xf32> to vector<16x8xbf16>
    %53 = vector.extract_strided_slice %10 {offsets = [0, 56], sizes = [16, 8], strides = [1, 1]} : vector<16x96xf32> to vector<16x8xf32>
    %54 = arith.truncf %53 : vector<16x8xf32> to vector<16x8xbf16>
    %55 = vector.extract_strided_slice %10 {offsets = [0, 64], sizes = [16, 8], strides = [1, 1]} : vector<16x96xf32> to vector<16x8xf32>
    %56 = arith.truncf %55 : vector<16x8xf32> to vector<16x8xbf16>
    %cst_17 = arith.constant dense<0.000000e+00> : vector<16x16xf32>
    %57 = tpu.matmul %52, %54, %cst_17 {dimension_numbers = #tpu.dot_dimension_numbers<[1], [1], [0], [0], [0, 0, 1, 0], [], []>} : vector<16x8xbf16>, vector<16x8xbf16>, vector<16x16xf32> -> vector<16x16xf32>
    %58 = arith.addf %57, %0 : vector<16x16xf32>
    %cst_18 = arith.constant dense<0xFF800000> : vector<16xf32>
    %59 = vector.multi_reduction <maximumf>, %58, %cst_18 [1] : vector<16x16xf32> to vector<16xf32>
    %60 = vector.shape_cast %59 : vector<16xf32> to vector<16x1xf32>
    %61 = vector.broadcast %60 : vector<16x1xf32> to vector<16x16xf32>
    %62 = arith.subf %58, %61 : vector<16x16xf32>
    %63 = math.exp %62 : vector<16x16xf32>
    %cst_19 = arith.constant dense<0.000000e+00> : vector<16xf32>
    %64 = vector.multi_reduction <add>, %63, %cst_19 [1] : vector<16x16xf32> to vector<16xf32>
    %65 = vector.shape_cast %64 : vector<16xf32> to vector<16x1xf32>
    %66 = tpu.reciprocal %65 {approx = true} : vector<16x1xf32> -> vector<16x1xf32>
    %67 = vector.broadcast %66 : vector<16x1xf32> to vector<16x16xf32>
    %68 = arith.mulf %63, %67 : vector<16x16xf32>
    %69 = arith.truncf %68 : vector<16x16xf32> to vector<16x16xbf16>
    %cst_20 = arith.constant dense<0.000000e+00> : vector<16x8xf32>
    %70 = tpu.matmul %69, %56, %cst_20 {dimension_numbers = #tpu.dot_dimension_numbers<[1], [0], [0], [1], [0, 0, 1, 1], [], []>} : vector<16x16xbf16>, vector<16x8xbf16>, vector<16x8xf32> -> vector<16x8xf32>
    %71 = vector.extract_strided_slice %10 {offsets = [0, 72], sizes = [16, 8], strides = [1, 1]} : vector<16x96xf32> to vector<16x8xf32>
    %72 = arith.truncf %71 : vector<16x8xf32> to vector<16x8xbf16>
    %73 = vector.extract_strided_slice %10 {offsets = [0, 80], sizes = [16, 8], strides = [1, 1]} : vector<16x96xf32> to vector<16x8xf32>
    %74 = arith.truncf %73 : vector<16x8xf32> to vector<16x8xbf16>
    %75 = vector.extract_strided_slice %10 {offsets = [0, 88], sizes = [16, 8], strides = [1, 1]} : vector<16x96xf32> to vector<16x8xf32>
    %76 = arith.truncf %75 : vector<16x8xf32> to vector<16x8xbf16>
    %cst_21 = arith.constant dense<0.000000e+00> : vector<16x16xf32>
    %77 = tpu.matmul %72, %74, %cst_21 {dimension_numbers = #tpu.dot_dimension_numbers<[1], [1], [0], [0], [0, 0, 1, 0], [], []>} : vector<16x8xbf16>, vector<16x8xbf16>, vector<16x16xf32> -> vector<16x16xf32>
    %78 = arith.addf %77, %0 : vector<16x16xf32>
    %cst_22 = arith.constant dense<0xFF800000> : vector<16xf32>
    %79 = vector.multi_reduction <maximumf>, %78, %cst_22 [1] : vector<16x16xf32> to vector<16xf32>
    %80 = vector.shape_cast %79 : vector<16xf32> to vector<16x1xf32>
    %81 = vector.broadcast %80 : vector<16x1xf32> to vector<16x16xf32>
    %82 = arith.subf %78, %81 : vector<16x16xf32>
    %83 = math.exp %82 : vector<16x16xf32>
    %cst_23 = arith.constant dense<0.000000e+00> : vector<16xf32>
    %84 = vector.multi_reduction <add>, %83, %cst_23 [1] : vector<16x16xf32> to vector<16xf32>
    %85 = vector.shape_cast %84 : vector<16xf32> to vector<16x1xf32>
    %86 = tpu.reciprocal %85 {approx = true} : vector<16x1xf32> -> vector<16x1xf32>
    %87 = vector.broadcast %86 : vector<16x1xf32> to vector<16x16xf32>
    %88 = arith.mulf %83, %87 : vector<16x16xf32>
    %89 = arith.truncf %88 : vector<16x16xf32> to vector<16x16xbf16>
    %cst_24 = arith.constant dense<0.000000e+00> : vector<16x8xf32>
    %90 = tpu.matmul %89, %76, %cst_24 {dimension_numbers = #tpu.dot_dimension_numbers<[1], [0], [0], [1], [0, 0, 1, 1], [], []>} : vector<16x16xbf16>, vector<16x8xbf16>, vector<16x8xf32> -> vector<16x8xf32>
    %91 = tpu.concatenate %30, %50, %70, %90 in 1 : vector<16x8xf32>, vector<16x8xf32>, vector<16x8xf32>, vector<16x8xf32> -> vector<16x32xf32>
    %92 = arith.truncf %91 : vector<16x32xf32> to vector<16x32xbf16>
    %c0_25 = arith.constant 0 : index
    %c0_26 = arith.constant 0 : index
    %c0_27 = arith.constant 0 : index
    %93 = vector.load %arg4[%c0_25, %c0_26, %c0_27] : memref<2x32x32xbf16, #tpu.memory_space<vmem>>, vector<1x32x32xbf16>
    %94 = vector.shape_cast %93 : vector<1x32x32xbf16> to vector<32x32xbf16>
    %cst_28 = arith.constant dense<0.000000e+00> : vector<16x32xf32>
    %95 = tpu.matmul %92, %94, %cst_28 {dimension_numbers = #tpu.dot_dimension_numbers<[1], [0], [0], [1], [0, 0, 1, 1], [], []>} : vector<16x32xbf16>, vector<32x32xbf16>, vector<16x32xf32> -> vector<16x32xf32>
    %96 = vector.extract_strided_slice %3 {offsets = [1, 0], sizes = [1, 32], strides = [1, 1]} : vector<8x128xf32> to vector<1x32xf32>
    %97 = vector.broadcast %96 : vector<1x32xf32> to vector<16x32xf32>
    %98 = arith.addf %95, %97 : vector<16x32xf32>
    %99 = arith.addf %1, %98 : vector<16x32xf32>
    %100 = vector.extract_strided_slice %3 {offsets = [2, 0], sizes = [1, 32], strides = [1, 1]} : vector<8x128xf32> to vector<1x32xf32>
    %101 = vector.extract_strided_slice %3 {offsets = [3, 0], sizes = [1, 32], strides = [1, 1]} : vector<8x128xf32> to vector<1x32xf32>
    %cst_29 = arith.constant dense<0.000000e+00> : vector<16xf32>
    %102 = vector.multi_reduction <add>, %99, %cst_29 [1] : vector<16x32xf32> to vector<16xf32>
    %103 = vector.shape_cast %102 : vector<16xf32> to vector<16x1xf32>
    %cst_30 = arith.constant 3.200000e+01 : f32
    %104 = vector.broadcast %cst_30 : f32 to vector<16x1xf32>
    %105 = arith.divf %103, %104 : vector<16x1xf32>
    %106 = vector.broadcast %105 : vector<16x1xf32> to vector<16x32xf32>
    %107 = arith.subf %99, %106 : vector<16x32xf32>
    %108 = arith.mulf %107, %107 : vector<16x32xf32>
    %cst_31 = arith.constant dense<0.000000e+00> : vector<16xf32>
    %109 = vector.multi_reduction <add>, %108, %cst_31 [1] : vector<16x32xf32> to vector<16xf32>
    %110 = vector.shape_cast %109 : vector<16xf32> to vector<16x1xf32>
    %cst_32 = arith.constant 3.200000e+01 : f32
    %111 = vector.broadcast %cst_32 : f32 to vector<16x1xf32>
    %112 = arith.divf %110, %111 : vector<16x1xf32>
    %113 = vector.broadcast %105 : vector<16x1xf32> to vector<16x32xf32>
    %114 = arith.subf %99, %113 : vector<16x32xf32>
    %cst_33 = arith.constant 9.99999996E-13 : f32
    %115 = vector.broadcast %cst_33 : f32 to vector<16x1xf32>
    %116 = arith.addf %112, %115 : vector<16x1xf32>
    %117 = math.rsqrt %116 : vector<16x1xf32>
    %118 = vector.broadcast %117 : vector<16x1xf32> to vector<16x32xf32>
    %119 = arith.mulf %114, %118 : vector<16x32xf32>
    %120 = vector.broadcast %100 : vector<1x32xf32> to vector<16x32xf32>
    %121 = arith.mulf %119, %120 : vector<16x32xf32>
    %122 = vector.broadcast %101 : vector<1x32xf32> to vector<16x32xf32>
    %123 = arith.addf %121, %122 : vector<16x32xf32>
    %124 = arith.truncf %123 : vector<16x32xf32> to vector<16x32xbf16>
    %c0_34 = arith.constant 0 : index
    %c0_35 = arith.constant 0 : index
    %c0_36 = arith.constant 0 : index
    %125 = vector.load %arg5[%c0_34, %c0_35, %c0_36] : memref<2x32x128xbf16, #tpu.memory_space<vmem>>, vector<1x32x128xbf16>
    %126 = vector.shape_cast %125 : vector<1x32x128xbf16> to vector<32x128xbf16>
    %cst_37 = arith.constant dense<0.000000e+00> : vector<16x128xf32>
    %127 = tpu.matmul %124, %126, %cst_37 {dimension_numbers = #tpu.dot_dimension_numbers<[1], [0], [0], [1], [0, 0, 1, 1], [], []>} : vector<16x32xbf16>, vector<32x128xbf16>, vector<16x128xf32> -> vector<16x128xf32>
    %128 = vector.extract_strided_slice %3 {offsets = [4, 0], sizes = [1, 128], strides = [1, 1]} : vector<8x128xf32> to vector<1x128xf32>
    %129 = vector.broadcast %128 : vector<1x128xf32> to vector<16x128xf32>
    %130 = arith.addf %127, %129 : vector<16x128xf32>
    %cst_38 = arith.constant 5.000000e-01 : f32
    %131 = vector.broadcast %cst_38 : f32 to vector<16x128xf32>
    %132 = arith.mulf %131, %130 : vector<16x128xf32>
    %cst_39 = arith.constant 4.471500e-02 : f32
    %133 = vector.broadcast %cst_39 : f32 to vector<16x128xf32>
    %134 = arith.mulf %133, %130 : vector<16x128xf32>
    %135 = arith.mulf %134, %130 : vector<16x128xf32>
    %136 = arith.mulf %135, %130 : vector<16x128xf32>
    %137 = arith.addf %130, %136 : vector<16x128xf32>
    %cst_40 = arith.constant 0.797884583 : f32
    %138 = vector.broadcast %cst_40 : f32 to vector<16x128xf32>
    %139 = arith.mulf %138, %137 : vector<16x128xf32>
    %140 = math.tanh %139 : vector<16x128xf32>
    %cst_41 = arith.constant 1.000000e+00 : f32
    %141 = vector.broadcast %cst_41 : f32 to vector<16x128xf32>
    %142 = arith.addf %141, %140 : vector<16x128xf32>
    %143 = arith.mulf %132, %142 : vector<16x128xf32>
    %144 = arith.truncf %143 : vector<16x128xf32> to vector<16x128xbf16>
    %c0_42 = arith.constant 0 : index
    %c0_43 = arith.constant 0 : index
    %c0_44 = arith.constant 0 : index
    %145 = vector.load %arg6[%c0_42, %c0_43, %c0_44] : memref<2x128x32xbf16, #tpu.memory_space<vmem>>, vector<1x128x32xbf16>
    %146 = vector.shape_cast %145 : vector<1x128x32xbf16> to vector<128x32xbf16>
    %cst_45 = arith.constant dense<0.000000e+00> : vector<16x32xf32>
    %147 = tpu.matmul %144, %146, %cst_45 {dimension_numbers = #tpu.dot_dimension_numbers<[1], [0], [0], [1], [0, 0, 1, 1], [], []>} : vector<16x128xbf16>, vector<128x32xbf16>, vector<16x32xf32> -> vector<16x32xf32>
    %148 = vector.extract_strided_slice %3 {offsets = [5, 0], sizes = [1, 32], strides = [1, 1]} : vector<8x128xf32> to vector<1x32xf32>
    %149 = vector.broadcast %148 : vector<1x32xf32> to vector<16x32xf32>
    %150 = arith.addf %147, %149 : vector<16x32xf32>
    %151 = arith.addf %123, %150 : vector<16x32xf32>
    %152 = vector.extract_strided_slice %3 {offsets = [6, 0], sizes = [1, 32], strides = [1, 1]} : vector<8x128xf32> to vector<1x32xf32>
    %153 = vector.extract_strided_slice %3 {offsets = [7, 0], sizes = [1, 32], strides = [1, 1]} : vector<8x128xf32> to vector<1x32xf32>
    %cst_46 = arith.constant dense<0.000000e+00> : vector<16xf32>
    %154 = vector.multi_reduction <add>, %151, %cst_46 [1] : vector<16x32xf32> to vector<16xf32>
    %155 = vector.shape_cast %154 : vector<16xf32> to vector<16x1xf32>
    %cst_47 = arith.constant 3.200000e+01 : f32
    %156 = vector.broadcast %cst_47 : f32 to vector<16x1xf32>
    %157 = arith.divf %155, %156 : vector<16x1xf32>
    %158 = vector.broadcast %157 : vector<16x1xf32> to vector<16x32xf32>
    %159 = arith.subf %151, %158 : vector<16x32xf32>
    %160 = arith.mulf %159, %159 : vector<16x32xf32>
    %cst_48 = arith.constant dense<0.000000e+00> : vector<16xf32>
    %161 = vector.multi_reduction <add>, %160, %cst_48 [1] : vector<16x32xf32> to vector<16xf32>
    %162 = vector.shape_cast %161 : vector<16xf32> to vector<16x1xf32>
    %cst_49 = arith.constant 3.200000e+01 : f32
    %163 = vector.broadcast %cst_49 : f32 to vector<16x1xf32>
    %164 = arith.divf %162, %163 : vector<16x1xf32>
    %165 = vector.broadcast %157 : vector<16x1xf32> to vector<16x32xf32>
    %166 = arith.subf %151, %165 : vector<16x32xf32>
    %cst_50 = arith.constant 9.99999996E-13 : f32
    %167 = vector.broadcast %cst_50 : f32 to vector<16x1xf32>
    %168 = arith.addf %164, %167 : vector<16x1xf32>
    %169 = math.rsqrt %168 : vector<16x1xf32>
    %170 = vector.broadcast %169 : vector<16x1xf32> to vector<16x32xf32>
    %171 = arith.mulf %166, %170 : vector<16x32xf32>
    %172 = vector.broadcast %152 : vector<1x32xf32> to vector<16x32xf32>
    %173 = arith.mulf %171, %172 : vector<16x32xf32>
    %174 = vector.broadcast %153 : vector<1x32xf32> to vector<16x32xf32>
    %175 = arith.addf %173, %174 : vector<16x32xf32>
    %c1 = arith.constant 1 : index
    %c0_51 = arith.constant 0 : index
    %c0_52 = arith.constant 0 : index
    %176 = vector.load %arg7[%c1, %c0_51, %c0_52] : memref<2x8x128xf32, #tpu.memory_space<vmem>>, vector<1x8x128xf32>
    %177 = vector.shape_cast %176 : vector<1x8x128xf32> to vector<8x128xf32>
    %178 = arith.truncf %175 : vector<16x32xf32> to vector<16x32xbf16>
    %c1_53 = arith.constant 1 : index
    %c0_54 = arith.constant 0 : index
    %c0_55 = arith.constant 0 : index
    %179 = vector.load %arg3[%c1_53, %c0_54, %c0_55] : memref<2x32x96xbf16, #tpu.memory_space<vmem>>, vector<1x32x96xbf16>
    %180 = vector.shape_cast %179 : vector<1x32x96xbf16> to vector<32x96xbf16>
    %cst_56 = arith.constant dense<0.000000e+00> : vector<16x96xf32>
    %181 = tpu.matmul %178, %180, %cst_56 {dimension_numbers = #tpu.dot_dimension_numbers<[1], [0], [0], [1], [0, 0, 1, 1], [], []>} : vector<16x32xbf16>, vector<32x96xbf16>, vector<16x96xf32> -> vector<16x96xf32>
    %182 = vector.extract_strided_slice %177 {offsets = [0, 0], sizes = [1, 96], strides = [1, 1]} : vector<8x128xf32> to vector<1x96xf32>
    %183 = vector.broadcast %182 : vector<1x96xf32> to vector<16x96xf32>
    %184 = arith.addf %181, %183 : vector<16x96xf32>
    %185 = vector.extract_strided_slice %184 {offsets = [0, 0], sizes = [16, 8], strides = [1, 1]} : vector<16x96xf32> to vector<16x8xf32>
    %186 = arith.truncf %185 : vector<16x8xf32> to vector<16x8xbf16>
    %187 = vector.extract_strided_slice %184 {offsets = [0, 8], sizes = [16, 8], strides = [1, 1]} : vector<16x96xf32> to vector<16x8xf32>
    %188 = arith.truncf %187 : vector<16x8xf32> to vector<16x8xbf16>
    %189 = vector.extract_strided_slice %184 {offsets = [0, 16], sizes = [16, 8], strides = [1, 1]} : vector<16x96xf32> to vector<16x8xf32>
    %190 = arith.truncf %189 : vector<16x8xf32> to vector<16x8xbf16>
    %cst_57 = arith.constant dense<0.000000e+00> : vector<16x16xf32>
    %191 = tpu.matmul %186, %188, %cst_57 {dimension_numbers = #tpu.dot_dimension_numbers<[1], [1], [0], [0], [0, 0, 1, 0], [], []>} : vector<16x8xbf16>, vector<16x8xbf16>, vector<16x16xf32> -> vector<16x16xf32>
    %192 = arith.addf %191, %0 : vector<16x16xf32>
    %cst_58 = arith.constant dense<0xFF800000> : vector<16xf32>
    %193 = vector.multi_reduction <maximumf>, %192, %cst_58 [1] : vector<16x16xf32> to vector<16xf32>
    %194 = vector.shape_cast %193 : vector<16xf32> to vector<16x1xf32>
    %195 = vector.broadcast %194 : vector<16x1xf32> to vector<16x16xf32>
    %196 = arith.subf %192, %195 : vector<16x16xf32>
    %197 = math.exp %196 : vector<16x16xf32>
    %cst_59 = arith.constant dense<0.000000e+00> : vector<16xf32>
    %198 = vector.multi_reduction <add>, %197, %cst_59 [1] : vector<16x16xf32> to vector<16xf32>
    %199 = vector.shape_cast %198 : vector<16xf32> to vector<16x1xf32>
    %200 = tpu.reciprocal %199 {approx = true} : vector<16x1xf32> -> vector<16x1xf32>
    %201 = vector.broadcast %200 : vector<16x1xf32> to vector<16x16xf32>
    %202 = arith.mulf %197, %201 : vector<16x16xf32>
    %203 = arith.truncf %202 : vector<16x16xf32> to vector<16x16xbf16>
    %cst_60 = arith.constant dense<0.000000e+00> : vector<16x8xf32>
    %204 = tpu.matmul %203, %190, %cst_60 {dimension_numbers = #tpu.dot_dimension_numbers<[1], [0], [0], [1], [0, 0, 1, 1], [], []>} : vector<16x16xbf16>, vector<16x8xbf16>, vector<16x8xf32> -> vector<16x8xf32>
    %205 = vector.extract_strided_slice %184 {offsets = [0, 24], sizes = [16, 8], strides = [1, 1]} : vector<16x96xf32> to vector<16x8xf32>
    %206 = arith.truncf %205 : vector<16x8xf32> to vector<16x8xbf16>
    %207 = vector.extract_strided_slice %184 {offsets = [0, 32], sizes = [16, 8], strides = [1, 1]} : vector<16x96xf32> to vector<16x8xf32>
    %208 = arith.truncf %207 : vector<16x8xf32> to vector<16x8xbf16>
    %209 = vector.extract_strided_slice %184 {offsets = [0, 40], sizes = [16, 8], strides = [1, 1]} : vector<16x96xf32> to vector<16x8xf32>
    %210 = arith.truncf %209 : vector<16x8xf32> to vector<16x8xbf16>
    %cst_61 = arith.constant dense<0.000000e+00> : vector<16x16xf32>
    %211 = tpu.matmul %206, %208, %cst_61 {dimension_numbers = #tpu.dot_dimension_numbers<[1], [1], [0], [0], [0, 0, 1, 0], [], []>} : vector<16x8xbf16>, vector<16x8xbf16>, vector<16x16xf32> -> vector<16x16xf32>
    %212 = arith.addf %211, %0 : vector<16x16xf32>
    %cst_62 = arith.constant dense<0xFF800000> : vector<16xf32>
    %213 = vector.multi_reduction <maximumf>, %212, %cst_62 [1] : vector<16x16xf32> to vector<16xf32>
    %214 = vector.shape_cast %213 : vector<16xf32> to vector<16x1xf32>
    %215 = vector.broadcast %214 : vector<16x1xf32> to vector<16x16xf32>
    %216 = arith.subf %212, %215 : vector<16x16xf32>
    %217 = math.exp %216 : vector<16x16xf32>
    %cst_63 = arith.constant dense<0.000000e+00> : vector<16xf32>
    %218 = vector.multi_reduction <add>, %217, %cst_63 [1] : vector<16x16xf32> to vector<16xf32>
    %219 = vector.shape_cast %218 : vector<16xf32> to vector<16x1xf32>
    %220 = tpu.reciprocal %219 {approx = true} : vector<16x1xf32> -> vector<16x1xf32>
    %221 = vector.broadcast %220 : vector<16x1xf32> to vector<16x16xf32>
    %222 = arith.mulf %217, %221 : vector<16x16xf32>
    %223 = arith.truncf %222 : vector<16x16xf32> to vector<16x16xbf16>
    %cst_64 = arith.constant dense<0.000000e+00> : vector<16x8xf32>
    %224 = tpu.matmul %223, %210, %cst_64 {dimension_numbers = #tpu.dot_dimension_numbers<[1], [0], [0], [1], [0, 0, 1, 1], [], []>} : vector<16x16xbf16>, vector<16x8xbf16>, vector<16x8xf32> -> vector<16x8xf32>
    %225 = vector.extract_strided_slice %184 {offsets = [0, 48], sizes = [16, 8], strides = [1, 1]} : vector<16x96xf32> to vector<16x8xf32>
    %226 = arith.truncf %225 : vector<16x8xf32> to vector<16x8xbf16>
    %227 = vector.extract_strided_slice %184 {offsets = [0, 56], sizes = [16, 8], strides = [1, 1]} : vector<16x96xf32> to vector<16x8xf32>
    %228 = arith.truncf %227 : vector<16x8xf32> to vector<16x8xbf16>
    %229 = vector.extract_strided_slice %184 {offsets = [0, 64], sizes = [16, 8], strides = [1, 1]} : vector<16x96xf32> to vector<16x8xf32>
    %230 = arith.truncf %229 : vector<16x8xf32> to vector<16x8xbf16>
    %cst_65 = arith.constant dense<0.000000e+00> : vector<16x16xf32>
    %231 = tpu.matmul %226, %228, %cst_65 {dimension_numbers = #tpu.dot_dimension_numbers<[1], [1], [0], [0], [0, 0, 1, 0], [], []>} : vector<16x8xbf16>, vector<16x8xbf16>, vector<16x16xf32> -> vector<16x16xf32>
    %232 = arith.addf %231, %0 : vector<16x16xf32>
    %cst_66 = arith.constant dense<0xFF800000> : vector<16xf32>
    %233 = vector.multi_reduction <maximumf>, %232, %cst_66 [1] : vector<16x16xf32> to vector<16xf32>
    %234 = vector.shape_cast %233 : vector<16xf32> to vector<16x1xf32>
    %235 = vector.broadcast %234 : vector<16x1xf32> to vector<16x16xf32>
    %236 = arith.subf %232, %235 : vector<16x16xf32>
    %237 = math.exp %236 : vector<16x16xf32>
    %cst_67 = arith.constant dense<0.000000e+00> : vector<16xf32>
    %238 = vector.multi_reduction <add>, %237, %cst_67 [1] : vector<16x16xf32> to vector<16xf32>
    %239 = vector.shape_cast %238 : vector<16xf32> to vector<16x1xf32>
    %240 = tpu.reciprocal %239 {approx = true} : vector<16x1xf32> -> vector<16x1xf32>
    %241 = vector.broadcast %240 : vector<16x1xf32> to vector<16x16xf32>
    %242 = arith.mulf %237, %241 : vector<16x16xf32>
    %243 = arith.truncf %242 : vector<16x16xf32> to vector<16x16xbf16>
    %cst_68 = arith.constant dense<0.000000e+00> : vector<16x8xf32>
    %244 = tpu.matmul %243, %230, %cst_68 {dimension_numbers = #tpu.dot_dimension_numbers<[1], [0], [0], [1], [0, 0, 1, 1], [], []>} : vector<16x16xbf16>, vector<16x8xbf16>, vector<16x8xf32> -> vector<16x8xf32>
    %245 = vector.extract_strided_slice %184 {offsets = [0, 72], sizes = [16, 8], strides = [1, 1]} : vector<16x96xf32> to vector<16x8xf32>
    %246 = arith.truncf %245 : vector<16x8xf32> to vector<16x8xbf16>
    %247 = vector.extract_strided_slice %184 {offsets = [0, 80], sizes = [16, 8], strides = [1, 1]} : vector<16x96xf32> to vector<16x8xf32>
    %248 = arith.truncf %247 : vector<16x8xf32> to vector<16x8xbf16>
    %249 = vector.extract_strided_slice %184 {offsets = [0, 88], sizes = [16, 8], strides = [1, 1]} : vector<16x96xf32> to vector<16x8xf32>
    %250 = arith.truncf %249 : vector<16x8xf32> to vector<16x8xbf16>
    %cst_69 = arith.constant dense<0.000000e+00> : vector<16x16xf32>
    %251 = tpu.matmul %246, %248, %cst_69 {dimension_numbers = #tpu.dot_dimension_numbers<[1], [1], [0], [0], [0, 0, 1, 0], [], []>} : vector<16x8xbf16>, vector<16x8xbf16>, vector<16x16xf32> -> vector<16x16xf32>
    %252 = arith.addf %251, %0 : vector<16x16xf32>
    %cst_70 = arith.constant dense<0xFF800000> : vector<16xf32>
    %253 = vector.multi_reduction <maximumf>, %252, %cst_70 [1] : vector<16x16xf32> to vector<16xf32>
    %254 = vector.shape_cast %253 : vector<16xf32> to vector<16x1xf32>
    %255 = vector.broadcast %254 : vector<16x1xf32> to vector<16x16xf32>
    %256 = arith.subf %252, %255 : vector<16x16xf32>
    %257 = math.exp %256 : vector<16x16xf32>
    %cst_71 = arith.constant dense<0.000000e+00> : vector<16xf32>
    %258 = vector.multi_reduction <add>, %257, %cst_71 [1] : vector<16x16xf32> to vector<16xf32>
    %259 = vector.shape_cast %258 : vector<16xf32> to vector<16x1xf32>
    %260 = tpu.reciprocal %259 {approx = true} : vector<16x1xf32> -> vector<16x1xf32>
    %261 = vector.broadcast %260 : vector<16x1xf32> to vector<16x16xf32>
    %262 = arith.mulf %257, %261 : vector<16x16xf32>
    %263 = arith.truncf %262 : vector<16x16xf32> to vector<16x16xbf16>
    %cst_72 = arith.constant dense<0.000000e+00> : vector<16x8xf32>
    %264 = tpu.matmul %263, %250, %cst_72 {dimension_numbers = #tpu.dot_dimension_numbers<[1], [0], [0], [1], [0, 0, 1, 1], [], []>} : vector<16x16xbf16>, vector<16x8xbf16>, vector<16x8xf32> -> vector<16x8xf32>
    %265 = tpu.concatenate %204, %224, %244, %264 in 1 : vector<16x8xf32>, vector<16x8xf32>, vector<16x8xf32>, vector<16x8xf32> -> vector<16x32xf32>
    %266 = arith.truncf %265 : vector<16x32xf32> to vector<16x32xbf16>
    %c1_73 = arith.constant 1 : index
    %c0_74 = arith.constant 0 : index
    %c0_75 = arith.constant 0 : index
    %267 = vector.load %arg4[%c1_73, %c0_74, %c0_75] : memref<2x32x32xbf16, #tpu.memory_space<vmem>>, vector<1x32x32xbf16>
    %268 = vector.shape_cast %267 : vector<1x32x32xbf16> to vector<32x32xbf16>
    %cst_76 = arith.constant dense<0.000000e+00> : vector<16x32xf32>
    %269 = tpu.matmul %266, %268, %cst_76 {dimension_numbers = #tpu.dot_dimension_numbers<[1], [0], [0], [1], [0, 0, 1, 1], [], []>} : vector<16x32xbf16>, vector<32x32xbf16>, vector<16x32xf32> -> vector<16x32xf32>
    %270 = vector.extract_strided_slice %177 {offsets = [1, 0], sizes = [1, 32], strides = [1, 1]} : vector<8x128xf32> to vector<1x32xf32>
    %271 = vector.broadcast %270 : vector<1x32xf32> to vector<16x32xf32>
    %272 = arith.addf %269, %271 : vector<16x32xf32>
    %273 = arith.addf %175, %272 : vector<16x32xf32>
    %274 = vector.extract_strided_slice %177 {offsets = [2, 0], sizes = [1, 32], strides = [1, 1]} : vector<8x128xf32> to vector<1x32xf32>
    %275 = vector.extract_strided_slice %177 {offsets = [3, 0], sizes = [1, 32], strides = [1, 1]} : vector<8x128xf32> to vector<1x32xf32>
    %cst_77 = arith.constant dense<0.000000e+00> : vector<16xf32>
    %276 = vector.multi_reduction <add>, %273, %cst_77 [1] : vector<16x32xf32> to vector<16xf32>
    %277 = vector.shape_cast %276 : vector<16xf32> to vector<16x1xf32>
    %cst_78 = arith.constant 3.200000e+01 : f32
    %278 = vector.broadcast %cst_78 : f32 to vector<16x1xf32>
    %279 = arith.divf %277, %278 : vector<16x1xf32>
    %280 = vector.broadcast %279 : vector<16x1xf32> to vector<16x32xf32>
    %281 = arith.subf %273, %280 : vector<16x32xf32>
    %282 = arith.mulf %281, %281 : vector<16x32xf32>
    %cst_79 = arith.constant dense<0.000000e+00> : vector<16xf32>
    %283 = vector.multi_reduction <add>, %282, %cst_79 [1] : vector<16x32xf32> to vector<16xf32>
    %284 = vector.shape_cast %283 : vector<16xf32> to vector<16x1xf32>
    %cst_80 = arith.constant 3.200000e+01 : f32
    %285 = vector.broadcast %cst_80 : f32 to vector<16x1xf32>
    %286 = arith.divf %284, %285 : vector<16x1xf32>
    %287 = vector.broadcast %279 : vector<16x1xf32> to vector<16x32xf32>
    %288 = arith.subf %273, %287 : vector<16x32xf32>
    %cst_81 = arith.constant 9.99999996E-13 : f32
    %289 = vector.broadcast %cst_81 : f32 to vector<16x1xf32>
    %290 = arith.addf %286, %289 : vector<16x1xf32>
    %291 = math.rsqrt %290 : vector<16x1xf32>
    %292 = vector.broadcast %291 : vector<16x1xf32> to vector<16x32xf32>
    %293 = arith.mulf %288, %292 : vector<16x32xf32>
    %294 = vector.broadcast %274 : vector<1x32xf32> to vector<16x32xf32>
    %295 = arith.mulf %293, %294 : vector<16x32xf32>
    %296 = vector.broadcast %275 : vector<1x32xf32> to vector<16x32xf32>
    %297 = arith.addf %295, %296 : vector<16x32xf32>
    %298 = arith.truncf %297 : vector<16x32xf32> to vector<16x32xbf16>
    %c1_82 = arith.constant 1 : index
    %c0_83 = arith.constant 0 : index
    %c0_84 = arith.constant 0 : index
    %299 = vector.load %arg5[%c1_82, %c0_83, %c0_84] : memref<2x32x128xbf16, #tpu.memory_space<vmem>>, vector<1x32x128xbf16>
    %300 = vector.shape_cast %299 : vector<1x32x128xbf16> to vector<32x128xbf16>
    %cst_85 = arith.constant dense<0.000000e+00> : vector<16x128xf32>
    %301 = tpu.matmul %298, %300, %cst_85 {dimension_numbers = #tpu.dot_dimension_numbers<[1], [0], [0], [1], [0, 0, 1, 1], [], []>} : vector<16x32xbf16>, vector<32x128xbf16>, vector<16x128xf32> -> vector<16x128xf32>
    %302 = vector.extract_strided_slice %177 {offsets = [4, 0], sizes = [1, 128], strides = [1, 1]} : vector<8x128xf32> to vector<1x128xf32>
    %303 = vector.broadcast %302 : vector<1x128xf32> to vector<16x128xf32>
    %304 = arith.addf %301, %303 : vector<16x128xf32>
    %cst_86 = arith.constant 5.000000e-01 : f32
    %305 = vector.broadcast %cst_86 : f32 to vector<16x128xf32>
    %306 = arith.mulf %305, %304 : vector<16x128xf32>
    %cst_87 = arith.constant 4.471500e-02 : f32
    %307 = vector.broadcast %cst_87 : f32 to vector<16x128xf32>
    %308 = arith.mulf %307, %304 : vector<16x128xf32>
    %309 = arith.mulf %308, %304 : vector<16x128xf32>
    %310 = arith.mulf %309, %304 : vector<16x128xf32>
    %311 = arith.addf %304, %310 : vector<16x128xf32>
    %cst_88 = arith.constant 0.797884583 : f32
    %312 = vector.broadcast %cst_88 : f32 to vector<16x128xf32>
    %313 = arith.mulf %312, %311 : vector<16x128xf32>
    %314 = math.tanh %313 : vector<16x128xf32>
    %cst_89 = arith.constant 1.000000e+00 : f32
    %315 = vector.broadcast %cst_89 : f32 to vector<16x128xf32>
    %316 = arith.addf %315, %314 : vector<16x128xf32>
    %317 = arith.mulf %306, %316 : vector<16x128xf32>
    %318 = arith.truncf %317 : vector<16x128xf32> to vector<16x128xbf16>
    %c1_90 = arith.constant 1 : index
    %c0_91 = arith.constant 0 : index
    %c0_92 = arith.constant 0 : index
    %319 = vector.load %arg6[%c1_90, %c0_91, %c0_92] : memref<2x128x32xbf16, #tpu.memory_space<vmem>>, vector<1x128x32xbf16>
    %320 = vector.shape_cast %319 : vector<1x128x32xbf16> to vector<128x32xbf16>
    %cst_93 = arith.constant dense<0.000000e+00> : vector<16x32xf32>
    %321 = tpu.matmul %318, %320, %cst_93 {dimension_numbers = #tpu.dot_dimension_numbers<[1], [0], [0], [1], [0, 0, 1, 1], [], []>} : vector<16x128xbf16>, vector<128x32xbf16>, vector<16x32xf32> -> vector<16x32xf32>
    %322 = vector.extract_strided_slice %177 {offsets = [5, 0], sizes = [1, 32], strides = [1, 1]} : vector<8x128xf32> to vector<1x32xf32>
    %323 = vector.broadcast %322 : vector<1x32xf32> to vector<16x32xf32>
    %324 = arith.addf %321, %323 : vector<16x32xf32>
    %325 = arith.addf %297, %324 : vector<16x32xf32>
    %326 = vector.extract_strided_slice %177 {offsets = [6, 0], sizes = [1, 32], strides = [1, 1]} : vector<8x128xf32> to vector<1x32xf32>
    %327 = vector.extract_strided_slice %177 {offsets = [7, 0], sizes = [1, 32], strides = [1, 1]} : vector<8x128xf32> to vector<1x32xf32>
    %cst_94 = arith.constant dense<0.000000e+00> : vector<16xf32>
    %328 = vector.multi_reduction <add>, %325, %cst_94 [1] : vector<16x32xf32> to vector<16xf32>
    %329 = vector.shape_cast %328 : vector<16xf32> to vector<16x1xf32>
    %cst_95 = arith.constant 3.200000e+01 : f32
    %330 = vector.broadcast %cst_95 : f32 to vector<16x1xf32>
    %331 = arith.divf %329, %330 : vector<16x1xf32>
    %332 = vector.broadcast %331 : vector<16x1xf32> to vector<16x32xf32>
    %333 = arith.subf %325, %332 : vector<16x32xf32>
    %334 = arith.mulf %333, %333 : vector<16x32xf32>
    %cst_96 = arith.constant dense<0.000000e+00> : vector<16xf32>
    %335 = vector.multi_reduction <add>, %334, %cst_96 [1] : vector<16x32xf32> to vector<16xf32>
    %336 = vector.shape_cast %335 : vector<16xf32> to vector<16x1xf32>
    %cst_97 = arith.constant 3.200000e+01 : f32
    %337 = vector.broadcast %cst_97 : f32 to vector<16x1xf32>
    %338 = arith.divf %336, %337 : vector<16x1xf32>
    %339 = vector.broadcast %331 : vector<16x1xf32> to vector<16x32xf32>
    %340 = arith.subf %325, %339 : vector<16x32xf32>
    %cst_98 = arith.constant 9.99999996E-13 : f32
    %341 = vector.broadcast %cst_98 : f32 to vector<16x1xf32>
    %342 = arith.addf %338, %341 : vector<16x1xf32>
    %343 = math.rsqrt %342 : vector<16x1xf32>
    %344 = vector.broadcast %343 : vector<16x1xf32> to vector<16x32xf32>
    %345 = arith.mulf %340, %344 : vector<16x32xf32>
    %346 = vector.broadcast %326 : vector<1x32xf32> to vector<16x32xf32>
    %347 = arith.mulf %345, %346 : vector<16x32xf32>
    %348 = vector.broadcast %327 : vector<1x32xf32> to vector<16x32xf32>
    %349 = arith.addf %347, %348 : vector<16x32xf32>
    %c0_99 = arith.constant 0 : index
    %c0_100 = arith.constant 0 : index
    %350 = vector.load %arg12[%c0_99, %c0_100] : memref<16x32xf32, #tpu.memory_space<vmem>>, vector<16x32xf32>
    tpu.vector_store %arg12[%c0_99, %c0_100], %349 {strides = array<i32>} : memref<16x32xf32, #tpu.memory_space<vmem>>, vector<16x32xf32>,
    %c0_101 = arith.constant 0 : index
    %c0_102 = arith.constant 0 : index
    %351 = tpu.strided_load %arg12[%c0_101, %c0_102] {strides = array<i32: 8, 1>} : memref<16x32xf32, #tpu.memory_space<vmem>>, vector<2x32xf32>
    %c0_103 = arith.constant 0 : index
    %c0_104 = arith.constant 0 : index
    %352 = vector.load %arg10[%c0_103, %c0_104] : memref<2x128xf32, #tpu.memory_space<vmem>>, vector<2x128xf32>
    %353 = arith.truncf %351 : vector<2x32xf32> to vector<2x32xbf16>
    %c0_105 = arith.constant 0 : index
    %c0_106 = arith.constant 0 : index
    %354 = vector.load %arg8[%c0_105, %c0_106] : memref<32x32xbf16, #tpu.memory_space<vmem>>, vector<32x32xbf16>
    %cst_107 = arith.constant dense<0.000000e+00> : vector<2x32xf32>
    %355 = tpu.matmul %353, %354, %cst_107 {dimension_numbers = #tpu.dot_dimension_numbers<[1], [0], [0], [1], [0, 0, 1, 1], [], []>} : vector<2x32xbf16>, vector<32x32xbf16>, vector<2x32xf32> -> vector<2x32xf32>
    %356 = vector.extract_strided_slice %352 {offsets = [0, 0], sizes = [1, 32], strides = [1, 1]} : vector<2x128xf32> to vector<1x32xf32>
    %357 = vector.broadcast %356 : vector<1x32xf32> to vector<2x32xf32>
    %358 = arith.addf %355, %357 : vector<2x32xf32>
    %359 = math.tanh %358 : vector<2x32xf32>
    %c0_108 = arith.constant 0 : index
    %c0_109 = arith.constant 0 : index
    %360 = vector.load %arg2[%c0_108, %c0_109] : memref<2x32xf32, #tpu.memory_space<vmem>>, vector<2x32xf32>
    %361 = arith.mulf %359, %360 : vector<2x32xf32>
    %362 = arith.truncf %361 : vector<2x32xf32> to vector<2x32xbf16>
    %c0_110 = arith.constant 0 : index
    %c0_111 = arith.constant 0 : index
    %363 = vector.load %arg9[%c0_110, %c0_111] : memref<32x128xbf16, #tpu.memory_space<vmem>>, vector<32x128xbf16>
    %cst_112 = arith.constant dense<0.000000e+00> : vector<2x128xf32>
    %364 = tpu.matmul %362, %363, %cst_112 {dimension_numbers = #tpu.dot_dimension_numbers<[1], [0], [0], [1], [0, 0, 1, 1], [], []>} : vector<2x32xbf16>, vector<32x128xbf16>, vector<2x128xf32> -> vector<2x128xf32>
    %365 = vector.extract_strided_slice %352 {offsets = [1, 0], sizes = [1, 128], strides = [1, 1]} : vector<2x128xf32> to vector<1x128xf32>
    %366 = vector.broadcast %365 : vector<1x128xf32> to vector<2x128xf32>
    %367 = arith.addf %364, %366 : vector<2x128xf32>
    %c0_113 = arith.constant 0 : index
    %c0_114 = arith.constant 0 : index
    %368 = vector.load %arg11[%c0_113, %c0_114] : memref<2x128xf32, #tpu.memory_space<vmem>>, vector<2x128xf32>
    tpu.vector_store %arg11[%c0_113, %c0_114], %367 {strides = array<i32>} : memref<2x128xf32, #tpu.memory_space<vmem>>, vector<2x128xf32>,
    return
  }
}

</mosaic_0001>

<llo_original>
// kernel: tpu_custom_call.1
$region0: #{tpu_custom_call.1}
  #allocation0 [shape = 'u32[]', space=smem, size = 0x4, offset = 0x4, fixed_abs, tag = 'smem constant byte address 0x4 - core index']
  #allocation1 [shape = 'u32[144,128]{1,0:T(1,128)}', space=vmem, size = 0x12000, scoped, tag = 'internal scratch']
  #allocation2 [shape = 'f32[16,32]{1,0:T(8,128)}', space=vmem, size = 0x2000, scoped, tag = 'scratch operand']
  %s0 = inlined_call_operand.vmem [shape: f32[16,32], index: 0, kind: input, shape index: {}]
  %s1 = inlined_call_operand.vmem [shape: f32[16,16], index: 1, kind: input, shape index: {}]
  %s2 = inlined_call_operand.hbm [shape: f32[2,32], index: 2, kind: input, shape index: {}]
  %s3 = inlined_call_operand.vmem [shape: bf16[2,32,96], index: 3, kind: input, shape index: {}]
  %s4 = inlined_call_operand.vmem [shape: bf16[2,32,32], index: 4, kind: input, shape index: {}]
  %s5 = inlined_call_operand.vmem [shape: bf16[2,32,128], index: 5, kind: input, shape index: {}]
  %s6 = inlined_call_operand.vmem [shape: bf16[2,128,32], index: 6, kind: input, shape index: {}]
  %s7 = inlined_call_operand.vmem [shape: f32[2,8,128], index: 7, kind: input, shape index: {}]
  %s8 = inlined_call_operand.vmem [shape: bf16[32,32], index: 8, kind: input, shape index: {}]
  %s9 = inlined_call_operand.vmem [shape: bf16[32,128], index: 9, kind: input, shape index: {}]
  %s10 = inlined_call_operand.vmem [shape: f32[2,128], index: 10, kind: input, shape index: {}]
  %s11 = inlined_call_operand.hbm [shape: f32[2,128], index: 11, kind: output, shape index: {}]
  %s12 = sld [smem:[#allocation0]]
  $region58: #{tpu_custom_call.1} parent=0
    _
  %s14 = ssub.s32 1, %s12
  %s15 = scalar_select 0, %s14, %s12
  $region1: #{tpu_custom_call.1} parent=0
    #allocation3 [shape = 'u8[1024]{0}', space=vmem, size = 0x400, scoped, tag = 'input window, operand 2, single buffered']
    #allocation4 [shape = 's32[1]{0}', space=sflag, size = 0x4, scoped, tag = 'scoped memory for tpu_custom_call.1']
    #allocation5 [shape = 's32[1]{0}', space=sflag, size = 0x4, scoped, tag = 'scoped memory for tpu_custom_call.1']
    #allocation6 [shape = 'u8[1024]{0}', space=vmem, size = 0x400, scoped, tag = 'output window, operand 0, single buffered']
    %16 = vsyncpa [#allocation4], 0
    %17 = vsyncpa [#allocation5], 0
    // Predicated region
    $region2: #{tpu_custom_call.1} parent=1 // pred_check
      _
    $region3: #{tpu_custom_call.1} parent=1 // pred_check_branch
      %19 = sbr.rel (0) target = $region5
    $region4: #{tpu_custom_call.1} parent=1 // pred_region
      _
    $region5: #{tpu_custom_call.1} parent=1 // pred_fallthru
      _
    // Predicated region
    $region6: #{tpu_custom_call.1} parent=1 // pred_check
      _
    $region7: #{tpu_custom_call.1} parent=1 // pred_check_branch
      %21 = sbr.rel (0) target = $region9
    $region8: #{tpu_custom_call.1} parent=1 // pred_region
      _
    $region9: #{tpu_custom_call.1} parent=1 // pred_fallthru
      _
    // Predicated region
    $region10: #{tpu_custom_call.1} parent=1 // pred_check
      _
    $region11: #{tpu_custom_call.1} parent=1 // pred_check_branch
      %23 = sbr.rel (0) target = $region13
    $region12: #{tpu_custom_call.1} parent=1 // pred_region
      %s25 = ssub.s32 32, 32
      %26 = vsyncadd [#allocation4], %s25
      %s28 = sshll.u32 [#allocation3], 4
      %s29 = int_to_ptr.vmem [resolvable:$true] %s28
      %31 = dma.hbm_to_vmem [thread:$0]  %s2, 32, %s29, [#allocation4]
    $region13: #{tpu_custom_call.1} parent=1 // pred_fallthru
      _
    // Predicated region
    $region14: #{tpu_custom_call.1} parent=1 // pred_check
      _
    $region15: #{tpu_custom_call.1} parent=1 // pred_check_branch
      %33 = sbr.rel (0) target = $region17
    $region16: #{tpu_custom_call.1} parent=1 // pred_region
      _
    $region17: #{tpu_custom_call.1} parent=1 // pred_fallthru
      _
    // Predicated region
    $region18: #{tpu_custom_call.1} parent=1 // pred_check
      _
    $region19: #{tpu_custom_call.1} parent=1 // pred_check_branch
      %35 = sbr.rel (0) target = $region21
    $region20: #{tpu_custom_call.1} parent=1 // pred_region
      _
    $region21: #{tpu_custom_call.1} parent=1 // pred_fallthru
      _
    // Predicated region
    $region22: #{tpu_custom_call.1} parent=1 // pred_check
      _
    $region23: #{tpu_custom_call.1} parent=1 // pred_check_branch
      %37 = sbr.rel (0) target = $region25
    $region24: #{tpu_custom_call.1} parent=1 // pred_region
      _
    $region25: #{tpu_custom_call.1} parent=1 // pred_fallthru
      _
    // Predicated region
    $region26: #{tpu_custom_call.1} parent=1 // pred_check
      _
    $region27: #{tpu_custom_call.1} parent=1 // pred_check_branch
      %39 = sbr.rel (0) target = $region29
    $region28: #{tpu_custom_call.1} parent=1 // pred_region
      _
    $region29: #{tpu_custom_call.1} parent=1 // pred_fallthru
      _
    // Predicated region
    $region30: #{tpu_custom_call.1} parent=1 // pred_check
      _
    $region31: #{tpu_custom_call.1} parent=1 // pred_check_branch
      %41 = sbr.rel (0) target = $region33
    $region32: #{tpu_custom_call.1} parent=1 // pred_region
      _
    $region33: #{tpu_custom_call.1} parent=1 // pred_fallthru
      _
    // Predicated region
    $region34: #{tpu_custom_call.1} parent=1 // pred_check
      _
    $region35: #{tpu_custom_call.1} parent=1 // pred_check_branch
      %43 = sbr.rel (0) target = $region37
    $region36: #{tpu_custom_call.1} parent=1 // pred_region
      _
    $region37: #{tpu_custom_call.1} parent=1 // pred_fallthru
      _
    // Predicated region
    $region38: #{tpu_custom_call.1} parent=1 // pred_check
      _
    $region39: #{tpu_custom_call.1} parent=1 // pred_check_branch
      %45 = sbr.rel (0) target = $region41
    $region40: #{tpu_custom_call.1} parent=1 // pred_region
      _
    $region41: #{tpu_custom_call.1} parent=1 // pred_fallthru
      _
    // Predicated region
    $region42: #{tpu_custom_call.1} parent=1 // pred_check
      _
    $region43: #{tpu_custom_call.1} parent=1 // pred_check_branch
      %47 = sbr.rel (0) target = $region45
    $region44: #{tpu_custom_call.1} parent=1 // pred_region
      _
    $region45: #{tpu_custom_call.1} parent=1 // pred_fallthru
      _
    // Predicated region
    $region46: #{tpu_custom_call.1} parent=1 // pred_check
      _
    $region47: #{tpu_custom_call.1} parent=1 // pred_check_branch
      %49 = sbr.rel (0) target = $region49
    $region48: #{tpu_custom_call.1} parent=1 // pred_region
      %50 = dma.done [#allocation4], 32
    $region49: #{tpu_custom_call.1} parent=1 // pred_fallthru
      _
    %v52 = vld [vmem:[%s1] sm:$0xff]
    %v53 = vld [vmem:[%s1 + $0x8] sm:$0xff]
    %v54 = vld [vmem:[%s0] sm:$0xff]
    %v55 = vld [vmem:[%s0 + $0x8] sm:$0xff]
    %v56 = vld [vmem:[%s7] sm:$0xff]
    %v57 = vpack.c.bf16 %v55, %v54
    %v58 = vld [vmem:[%s3] sm:$0xf]
    %v59 = vld [vmem:[%s3 + $0x4] sm:$0xf]
    %v60 = vld [vmem:[%s3 + $0x8] sm:$0xf]
    %v61 = vld [vmem:[%s3 + $0xc] sm:$0xf]
    %v62 = vlaneseq
    %v63 = vshrl.u32 %v62, 7
    %v64 = vsub.s32 0, %v63
    %v65 = vrot.slane %v56, %v64
    %v70 = vunpack.c.l.b16 %v58
    %v71 = vunpack.c.l.b16 %v59
    %v72 = vunpack.c.l.b16 %v60
    %v73 = vunpack.c.l.b16 %v61
    %v74 = vpack.c.b16 %v71, %v70
    %v75 = vpack.c.b16 %v73, %v72
    %vm78 = vcmask 261120
    %v80 = vsel %vm78, %v57, 0
    %82 = vmatprep.subr.bf16.mxu0 0
    %83 = vmatpush1.bf16.msra.mxu0 0
    %84 = vmatprep.subr.bf16.mxu0 0
    %85 = vmatpush1.bf16.msra.mxu0 0
    %86 = vmatprep.subr.bf16.mxu0 0
    %87 = vmatpush1.bf16.msra.mxu0 0
    %88 = vmatprep.subr.bf16.mxu0 0
    %89 = vmatpush1.bf16.msra.mxu0 0
    %90 = vmatprep.subr.bf16.mxu0 0
    %91 = vmatpush1.bf16.msra.mxu0 0
    %92 = vmatprep.subr.bf16.mxu0 0
    %93 = vmatpush1.bf16.msra.mxu0 0
    %94 = vmatprep.subr.bf16.mxu0 0
    %95 = vmatpush1.bf16.msra.mxu0 %v75
    %96 = vmatprep.subr.bf16.mxu0 0
    %97 = vmatpush1.bf16.msra.mxu0 %v74
    %98 = vmatprep.subr.bf16.mxu0 0
    %99 = vmatpush2.bf16.msra.mxu0 0
    %100 = vmatprep.subr.bf16.mxu0 0
    %101 = vmatpush2.bf16.msra.mxu0 0
    %102 = vmatprep.subr.bf16.mxu0 0
    %103 = vmatpush2.bf16.msra.mxu0 0
    %104 = vmatprep.subr.bf16.mxu0 0
    %105 = vmatpush2.bf16.msra.mxu0 0
    %106 = vmatprep.subr.bf16.mxu0 0
    %107 = vmatpush2.bf16.msra.mxu0 0
    %108 = vmatprep.subr.bf16.mxu0 0
    %109 = vmatpush2.bf16.msra.mxu0 0
    %110 = vmatprep.subr.bf16.mxu0 0
    %111 = vmatpush2.bf16.msra.mxu0 0
    %112 = vmatprep.subr.bf16.mxu0 0
    %113 = vmatpush2.bf16.msra.mxu0 0
    %114 = vmatprep.mubr.bf16.mxu0 0
    %115 = vmatmul.mubr.bf16.gmra.mxu0 %v80
    %v116 = vpop.f32.mrf.mxu0
    %v117 = vadd.f32 %v65, %v116
    %v118 = vpop.f32.mrf.mxu0
    %v119 = vpop.f32.mrf.mxu0
    %v120 = vadd.f32 %v65, %v119
    %v121 = vpop.f32.mrf.mxu0
    %122 = vdwg.mxu0
    %v123 = vpack.c.bf16 %v120, %v117
    %125 = vrot.lane.b32.xlu0 %v123, 120
    %v126 = vpop.permute.xlu0 %125
    %vm127 = vcmask 64512
    %v129 = vsel %vm127, %v123, 0
    %v132 = vsel %vm127, %v126, 0
    %134 = vmatprep.subr.bf16.mxu0 0
    %135 = vmatpush1.bf16.xpose.msra.mxu0 0
    %136 = vmatprep.subr.bf16.mxu0 0
    %137 = vmatpush1.bf16.xpose.msra.mxu0 0
    %138 = vmatprep.subr.bf16.mxu0 0
    %139 = vmatpush1.bf16.xpose.msra.mxu0 0
    %140 = vmatprep.subr.bf16.mxu0 0
    %141 = vmatpush1.bf16.xpose.msra.mxu0 0
    %142 = vmatprep.subr.bf16.mxu0 0
    %143 = vmatpush1.bf16.xpose.msra.mxu0 0
    %144 = vmatprep.subr.bf16.mxu0 0
    %145 = vmatpush1.bf16.xpose.msra.mxu0 0
    %146 = vmatprep.subr.bf16.mxu0 0
    %147 = vmatpush1.bf16.xpose.msra.mxu0 0
    %148 = vmatprep.subr.bf16.mxu0 0
    %149 = vmatpush1.bf16.xpose.msra.mxu0 %v132
    %150 = vmatprep.subr.bf16.mxu0 0
    %151 = vmatpush2.bf16.xpose.msra.mxu0 0
    %152 = vmatprep.subr.bf16.mxu0 0
    %153 = vmatpush2.bf16.xpose.msra.mxu0 0
    %154 = vmatprep.subr.bf16.mxu0 0
    %155 = vmatpush2.bf16.xpose.msra.mxu0 0
    %156 = vmatprep.subr.bf16.mxu0 0
    %157 = vmatpush2.bf16.xpose.msra.mxu0 0
    %158 = vmatprep.subr.bf16.mxu0 0
    %159 = vmatpush2.bf16.xpose.msra.mxu0 0
    %160 = vmatprep.subr.bf16.mxu0 0
    %161 = vmatpush2.bf16.xpose.msra.mxu0 0
    %162 = vmatprep.subr.bf16.mxu0 0
    %163 = vmatpush2.bf16.xpose.msra.mxu0 0
    %164 = vmatprep.subr.bf16.mxu0 0
    %165 = vmatpush2.bf16.xpose.msra.mxu0 0
    %166 = vmatprep.mubr.bf16.mxu0 0
    %167 = vmatmul.mubr.bf16.gmra.mxu0 %v129
    %v168 = vpop.f32.mrf.mxu0
    %v169 = vadd.f32 %v52, %v168
    %v170 = vpop.f32.mrf.mxu0
    %v171 = vpop.f32.mrf.mxu0
    %v172 = vadd.f32 %v53, %v171
    %v173 = vpop.f32.mrf.mxu0
    %174 = vdwg.mxu0
    %vm175 = vcmask 130048
    %v176 = vsel %vm175, %v169, -inf
    %177 = vmax.xlane.f32.xlu0 %v176
    %v178 = vpop.xlane.xlu0 %177
    %v179 = vsel %vm175, %v172, -inf
    %180 = vmax.xlane.f32.xlu0 %v179
    %v181 = vpop.xlane.xlu0 %180
    %v182 = vsub.f32 %v169, %v178
    %v183 = vsub.f32 %v172, %v181
    %v184 = vmul.f32 %v182, 1.442695
    %v185 = vpow.pop %v184
    %v186 = vmul.f32 %v183, 1.442695
    %v187 = vpow.pop %v186
    %v188 = vsel %vm175, %v185, 0.0
    %189 = vadd.xlane.f32.xlu0 %v188
    %v190 = vpop.xlane.xlu0 %189
    %v191 = vsel %vm175, %v187, 0.0
    %192 = vadd.xlane.f32.xlu0 %v191
    %v193 = vpop.xlane.xlu0 %192
    %v194 = vrcp.pop %v190
    %v195 = vrcp.pop %v193
    %v196 = vmul.f32 %v185, %v194
    %v197 = vmul.f32 %v187, %v195
    %v198 = vpack.c.bf16 %v197, %v196
    %199 = vrot.lane.b32.xlu0 %v123, 112
    %v200 = vpop.permute.xlu0 %199
    %v203 = vsel %vm175, %v198, 0
    %205 = vmatprep.subr.bf16.mxu0 0
    %206 = vmatpush1.bf16.msra.mxu0 0
    %207 = vmatprep.subr.bf16.mxu0 0
    %208 = vmatpush1.bf16.msra.mxu0 0
    %209 = vmatprep.subr.bf16.mxu0 0
    %210 = vmatpush1.bf16.msra.mxu0 0
    %211 = vmatprep.subr.bf16.mxu0 0
    %212 = vmatpush1.bf16.msra.mxu0 0
    %213 = vmatprep.subr.bf16.mxu0 0
    %214 = vmatpush1.bf16.msra.mxu0 0
    %215 = vmatprep.subr.bf16.mxu0 0
    %216 = vmatpush1.bf16.msra.mxu0 0
    %217 = vmatprep.subr.bf16.mxu0 0
    %218 = vmatpush1.bf16.msra.mxu0 0
    %219 = vmatprep.subr.bf16.mxu0 0
    %220 = vmatpush1.bf16.msra.mxu0 %v200
    %221 = vmatprep.subr.bf16.mxu0 0
    %222 = vmatpush2.bf16.msra.mxu0 0
    %223 = vmatprep.subr.bf16.mxu0 0
    %224 = vmatpush2.bf16.msra.mxu0 0
    %225 = vmatprep.subr.bf16.mxu0 0
    %226 = vmatpush2.bf16.msra.mxu0 0
    %227 = vmatprep.subr.bf16.mxu0 0
    %228 = vmatpush2.bf16.msra.mxu0 0
    %229 = vmatprep.subr.bf16.mxu0 0
    %230 = vmatpush2.bf16.msra.mxu0 0
    %231 = vmatprep.subr.bf16.mxu0 0
    %232 = vmatpush2.bf16.msra.mxu0 0
    %233 = vmatprep.subr.bf16.mxu0 0
    %234 = vmatpush2.bf16.msra.mxu0 0
    %235 = vmatprep.subr.bf16.mxu0 0
    %236 = vmatpush2.bf16.msra.mxu0 0
    %237 = vmatprep.mubr.bf16.mxu0 0
    %238 = vmatmul.mubr.bf16.gmra.mxu0 %v203
    %v239 = vpop.f32.mrf.mxu0
    %v240 = vadd.f32 0.0, %v239
    %v241 = vpop.f32.mrf.mxu0
    %v242 = vpop.f32.mrf.mxu0
    %v243 = vadd.f32 0.0, %v242
    %v244 = vpop.f32.mrf.mxu0
    %245 = vdwg.mxu0
    %246 = vrot.lane.b32.xlu0 %v123, 104
    %v247 = vpop.permute.xlu0 %246
    %248 = vrot.lane.b32.xlu0 %v123, 96
    %v249 = vpop.permute.xlu0 %248
    %v251 = vsel %vm127, %v247, 0
    %v254 = vsel %vm127, %v249, 0
    %256 = vmatprep.subr.bf16.mxu0 0
    %257 = vmatpush1.bf16.xpose.msra.mxu0 0
    %258 = vmatprep.subr.bf16.mxu0 0
    %259 = vmatpush1.bf16.xpose.msra.mxu0 0
    %260 = vmatprep.subr.bf16.mxu0 0
    %261 = vmatpush1.bf16.xpose.msra.mxu0 0
    %262 = vmatprep.subr.bf16.mxu0 0
    %263 = vmatpush1.bf16.xpose.msra.mxu0 0
    %264 = vmatprep.subr.bf16.mxu0 0
    %265 = vmatpush1.bf16.xpose.msra.mxu0 0
    %266 = vmatprep.subr.bf16.mxu0 0
    %267 = vmatpush1.bf16.xpose.msra.mxu0 0
    %268 = vmatprep.subr.bf16.mxu0 0
    %269 = vmatpush1.bf16.xpose.msra.mxu0 0
    %270 = vmatprep.subr.bf16.mxu0 0
    %271 = vmatpush1.bf16.xpose.msra.mxu0 %v254
    %272 = vmatprep.subr.bf16.mxu0 0
    %273 = vmatpush2.bf16.xpose.msra.mxu0 0
    %274 = vmatprep.subr.bf16.mxu0 0
    %275 = vmatpush2.bf16.xpose.msra.mxu0 0
    %276 = vmatprep.subr.bf16.mxu0 0
    %277 = vmatpush2.bf16.xpose.msra.mxu0 0
    %278 = vmatprep.subr.bf16.mxu0 0
    %279 = vmatpush2.bf16.xpose.msra.mxu0 0
    %280 = vmatprep.subr.bf16.mxu0 0
    %281 = vmatpush2.bf16.xpose.msra.mxu0 0
    %282 = vmatprep.subr.bf16.mxu0 0
    %283 = vmatpush2.bf16.xpose.msra.mxu0 0
    %284 = vmatprep.subr.bf16.mxu0 0
    %285 = vmatpush2.bf16.xpose.msra.mxu0 0
    %286 = vmatprep.subr.bf16.mxu0 0
    %287 = vmatpush2.bf16.xpose.msra.mxu0 0
    %288 = vmatprep.mubr.bf16.mxu0 0
    %289 = vmatmul.mubr.bf16.gmra.mxu0 %v251
    %v290 = vpop.f32.mrf.mxu0
    %v291 = vadd.f32 %v52, %v290
    %v292 = vpop.f32.mrf.mxu0
    %v293 = vpop.f32.mrf.mxu0
    %v294 = vadd.f32 %v53, %v293
    %v295 = vpop.f32.mrf.mxu0
    %296 = vdwg.mxu0
    %v297 = vsel %vm175, %v291, -inf
    %298 = vmax.xlane.f32.xlu0 %v297
    %v299 = vpop.xlane.xlu0 %298
    %v300 = vsel %vm175, %v294, -inf
    %301 = vmax.xlane.f32.xlu0 %v300
    %v302 = vpop.xlane.xlu0 %301
    %v303 = vsub.f32 %v291, %v299
    %v304 = vsub.f32 %v294, %v302
    %v305 = vmul.f32 %v303, 1.442695
    %v306 = vpow.pop %v305
    %v307 = vmul.f32 %v304, 1.442695
    %v308 = vpow.pop %v307
    %v309 = vsel %vm175, %v306, 0.0
    %310 = vadd.xlane.f32.xlu0 %v309
    %v311 = vpop.xlane.xlu0 %310
    %v312 = vsel %vm175, %v308, 0.0
    %313 = vadd.xlane.f32.xlu0 %v312
    %v314 = vpop.xlane.xlu0 %313
    %v315 = vrcp.pop %v311
    %v316 = vrcp.pop %v314
    %v317 = vmul.f32 %v306, %v315
    %v318 = vmul.f32 %v308, %v316
    %v319 = vpack.c.bf16 %v318, %v317
    %320 = vrot.lane.b32.xlu0 %v123, 88
    %v321 = vpop.permute.xlu0 %320
    %v324 = vsel %vm175, %v319, 0
    %326 = vmatprep.subr.bf16.mxu0 0
    %327 = vmatpush1.bf16.msra.mxu0 0
    %328 = vmatprep.subr.bf16.mxu0 0
    %329 = vmatpush1.bf16.msra.mxu0 0
    %330 = vmatprep.subr.bf16.mxu0 0
    %331 = vmatpush1.bf16.msra.mxu0 0
    %332 = vmatprep.subr.bf16.mxu0 0
    %333 = vmatpush1.bf16.msra.mxu0 0
    %334 = vmatprep.subr.bf16.mxu0 0
    %335 = vmatpush1.bf16.msra.mxu0 0
    %336 = vmatprep.subr.bf16.mxu0 0
    %337 = vmatpush1.bf16.msra.mxu0 0
    %338 = vmatprep.subr.bf16.mxu0 0
    %339 = vmatpush1.bf16.msra.mxu0 0
    %340 = vmatprep.subr.bf16.mxu0 0
    %341 = vmatpush1.bf16.msra.mxu0 %v321
    %342 = vmatprep.subr.bf16.mxu0 0
    %343 = vmatpush2.bf16.msra.mxu0 0
    %344 = vmatprep.subr.bf16.mxu0 0
    %345 = vmatpush2.bf16.msra.mxu0 0
    %346 = vmatprep.subr.bf16.mxu0 0
    %347 = vmatpush2.bf16.msra.mxu0 0
    %348 = vmatprep.subr.bf16.mxu0 0
    %349 = vmatpush2.bf16.msra.mxu0 0
    %350 = vmatprep.subr.bf16.mxu0 0
    %351 = vmatpush2.bf16.msra.mxu0 0
    %352 = vmatprep.subr.bf16.mxu0 0
    %353 = vmatpush2.bf16.msra.mxu0 0
    %354 = vmatprep.subr.bf16.mxu0 0
    %355 = vmatpush2.bf16.msra.mxu0 0
    %356 = vmatprep.subr.bf16.mxu0 0
    %357 = vmatpush2.bf16.msra.mxu0 0
    %358 = vmatprep.mubr.bf16.mxu0 0
    %359 = vmatmul.mubr.bf16.gmra.mxu0 %v324
    %v360 = vpop.f32.mrf.mxu0
    %v361 = vadd.f32 0.0, %v360
    %v362 = vpop.f32.mrf.mxu0
    %v363 = vpop.f32.mrf.mxu0
    %v364 = vadd.f32 0.0, %v363
    %v365 = vpop.f32.mrf.mxu0
    %366 = vdwg.mxu0
    %367 = vrot.lane.b32.xlu0 %v123, 80
    %v368 = vpop.permute.xlu0 %367
    %369 = vrot.lane.b32.xlu0 %v123, 72
    %v370 = vpop.permute.xlu0 %369
    %v372 = vsel %vm127, %v368, 0
    %v375 = vsel %vm127, %v370, 0
    %377 = vmatprep.subr.bf16.mxu0 0
    %378 = vmatpush1.bf16.xpose.msra.mxu0 0
    %379 = vmatprep.subr.bf16.mxu0 0
    %380 = vmatpush1.bf16.xpose.msra.mxu0 0
    %381 = vmatprep.subr.bf16.mxu0 0
    %382 = vmatpush1.bf16.xpose.msra.mxu0 0
    %383 = vmatprep.subr.bf16.mxu0 0
    %384 = vmatpush1.bf16.xpose.msra.mxu0 0
    %385 = vmatprep.subr.bf16.mxu0 0
    %386 = vmatpush1.bf16.xpose.msra.mxu0 0
    %387 = vmatprep.subr.bf16.mxu0 0
    %388 = vmatpush1.bf16.xpose.msra.mxu0 0
    %389 = vmatprep.subr.bf16.mxu0 0
    %390 = vmatpush1.bf16.xpose.msra.mxu0 0
    %391 = vmatprep.subr.bf16.mxu0 0
    %392 = vmatpush1.bf16.xpose.msra.mxu0 %v375
    %393 = vmatprep.subr.bf16.mxu0 0
    %394 = vmatpush2.bf16.xpose.msra.mxu0 0
    %395 = vmatprep.subr.bf16.mxu0 0
    %396 = vmatpush2.bf16.xpose.msra.mxu0 0
    %397 = vmatprep.subr.bf16.mxu0 0
    %398 = vmatpush2.bf16.xpose.msra.mxu0 0
    %399 = vmatprep.subr.bf16.mxu0 0
    %400 = vmatpush2.bf16.xpose.msra.mxu0 0
    %401 = vmatprep.subr.bf16.mxu0 0
    %402 = vmatpush2.bf16.xpose.msra.mxu0 0
    %403 = vmatprep.subr.bf16.mxu0 0
    %404 = vmatpush2.bf16.xpose.msra.mxu0 0
    %405 = vmatprep.subr.bf16.mxu0 0
    %406 = vmatpush2.bf16.xpose.msra.mxu0 0
    %407 = vmatprep.subr.bf16.mxu0 0
    %408 = vmatpush2.bf16.xpose.msra.mxu0 0
    %409 = vmatprep.mubr.bf16.mxu0 0
    %410 = vmatmul.mubr.bf16.gmra.mxu0 %v372
    %v411 = vpop.f32.mrf.mxu0
    %v412 = vadd.f32 %v52, %v411
    %v413 = vpop.f32.mrf.mxu0
    %v414 = vpop.f32.mrf.mxu0
    %v415 = vadd.f32 %v53, %v414
    %v416 = vpop.f32.mrf.mxu0
    %417 = vdwg.mxu0
    %v418 = vsel %vm175, %v412, -inf
    %419 = vmax.xlane.f32.xlu0 %v418
    %v420 = vpop.xlane.xlu0 %419
    %v421 = vsel %vm175, %v415, -inf
    %422 = vmax.xlane.f32.xlu0 %v421
    %v423 = vpop.xlane.xlu0 %422
    %v424 = vsub.f32 %v412, %v420
    %v425 = vsub.f32 %v415, %v423
    %v426 = vmul.f32 %v424, 1.442695
    %v427 = vpow.pop %v426
    %v428 = vmul.f32 %v425, 1.442695
    %v429 = vpow.pop %v428
    %v430 = vsel %vm175, %v427, 0.0
    %431 = vadd.xlane.f32.xlu0 %v430
    %v432 = vpop.xlane.xlu0 %431
    %v433 = vsel %vm175, %v429, 0.0
    %434 = vadd.xlane.f32.xlu0 %v433
    %v435 = vpop.xlane.xlu0 %434
    %v436 = vrcp.pop %v432
    %v437 = vrcp.pop %v435
    %v438 = vmul.f32 %v427, %v436
    %v439 = vmul.f32 %v429, %v437
    %v440 = vpack.c.bf16 %v439, %v438
    %441 = vrot.lane.b32.xlu0 %v123, 64
    %v442 = vpop.permute.xlu0 %441
    %v445 = vsel %vm175, %v440, 0
    %447 = vmatprep.subr.bf16.mxu0 0
    %448 = vmatpush1.bf16.msra.mxu0 0
    %449 = vmatprep.subr.bf16.mxu0 0
    %450 = vmatpush1.bf16.msra.mxu0 0
    %451 = vmatprep.subr.bf16.mxu0 0
    %452 = vmatpush1.bf16.msra.mxu0 0
    %453 = vmatprep.subr.bf16.mxu0 0
    %454 = vmatpush1.bf16.msra.mxu0 0
    %455 = vmatprep.subr.bf16.mxu0 0
    %456 = vmatpush1.bf16.msra.mxu0 0
    %457 = vmatprep.subr.bf16.mxu0 0
    %458 = vmatpush1.bf16.msra.mxu0 0
    %459 = vmatprep.subr.bf16.mxu0 0
    %460 = vmatpush1.bf16.msra.mxu0 0
    %461 = vmatprep.subr.bf16.mxu0 0
    %462 = vmatpush1.bf16.msra.mxu0 %v442
    %463 = vmatprep.subr.bf16.mxu0 0
    %464 = vmatpush2.bf16.msra.mxu0 0
    %465 = vmatprep.subr.bf16.mxu0 0
    %466 = vmatpush2.bf16.msra.mxu0 0
    %467 = vmatprep.subr.bf16.mxu0 0
    %468 = vmatpush2.bf16.msra.mxu0 0
    %469 = vmatprep.subr.bf16.mxu0 0
    %470 = vmatpush2.bf16.msra.mxu0 0
    %471 = vmatprep.subr.bf16.mxu0 0
    %472 = vmatpush2.bf16.msra.mxu0 0
    %473 = vmatprep.subr.bf16.mxu0 0
    %474 = vmatpush2.bf16.msra.mxu0 0
    %475 = vmatprep.subr.bf16.mxu0 0
    %476 = vmatpush2.bf16.msra.mxu0 0
    %477 = vmatprep.subr.bf16.mxu0 0
    %478 = vmatpush2.bf16.msra.mxu0 0
    %479 = vmatprep.mubr.bf16.mxu0 0
    %480 = vmatmul.mubr.bf16.gmra.mxu0 %v445
    %v481 = vpop.f32.mrf.mxu0
    %v482 = vadd.f32 0.0, %v481
    %v483 = vpop.f32.mrf.mxu0
    %v484 = vpop.f32.mrf.mxu0
    %v485 = vadd.f32 0.0, %v484
    %v486 = vpop.f32.mrf.mxu0
    %487 = vdwg.mxu0
    %488 = vrot.lane.b32.xlu0 %v123, 56
    %v489 = vpop.permute.xlu0 %488
    %490 = vrot.lane.b32.xlu0 %v123, 48
    %v491 = vpop.permute.xlu0 %490
    %v493 = vsel %vm127, %v489, 0
    %v496 = vsel %vm127, %v491, 0
    %498 = vmatprep.subr.bf16.mxu0 0
    %499 = vmatpush1.bf16.xpose.msra.mxu0 0
    %500 = vmatprep.subr.bf16.mxu0 0
    %501 = vmatpush1.bf16.xpose.msra.mxu0 0
    %502 = vmatprep.subr.bf16.mxu0 0
    %503 = vmatpush1.bf16.xpose.msra.mxu0 0
    %504 = vmatprep.subr.bf16.mxu0 0
    %505 = vmatpush1.bf16.xpose.msra.mxu0 0
    %506 = vmatprep.subr.bf16.mxu0 0
    %507 = vmatpush1.bf16.xpose.msra.mxu0 0
    %508 = vmatprep.subr.bf16.mxu0 0
    %509 = vmatpush1.bf16.xpose.msra.mxu0 0
    %510 = vmatprep.subr.bf16.mxu0 0
    %511 = vmatpush1.bf16.xpose.msra.mxu0 0
    %512 = vmatprep.subr.bf16.mxu0 0
    %513 = vmatpush1.bf16.xpose.msra.mxu0 %v496
    %514 = vmatprep.subr.bf16.mxu0 0
    %515 = vmatpush2.bf16.xpose.msra.mxu0 0
    %516 = vmatprep.subr.bf16.mxu0 0
    %517 = vmatpush2.bf16.xpose.msra.mxu0 0
    %518 = vmatprep.subr.bf16.mxu0 0
    %519 = vmatpush2.bf16.xpose.msra.mxu0 0
    %520 = vmatprep.subr.bf16.mxu0 0
    %521 = vmatpush2.bf16.xpose.msra.mxu0 0
    %522 = vmatprep.subr.bf16.mxu0 0
    %523 = vmatpush2.bf16.xpose.msra.mxu0 0
    %524 = vmatprep.subr.bf16.mxu0 0
    %525 = vmatpush2.bf16.xpose.msra.mxu0 0
    %526 = vmatprep.subr.bf16.mxu0 0
    %527 = vmatpush2.bf16.xpose.msra.mxu0 0
    %528 = vmatprep.subr.bf16.mxu0 0
    %529 = vmatpush2.bf16.xpose.msra.mxu0 0
    %530 = vmatprep.mubr.bf16.mxu0 0
    %531 = vmatmul.mubr.bf16.gmra.mxu0 %v493
    %v532 = vpop.f32.mrf.mxu0
    %v533 = vadd.f32 %v52, %v532
    %v534 = vpop.f32.mrf.mxu0
    %v535 = vpop.f32.mrf.mxu0
    %v536 = vadd.f32 %v53, %v535
    %v537 = vpop.f32.mrf.mxu0
    %538 = vdwg.mxu0
    %v539 = vsel %vm175, %v533, -inf
    %540 = vmax.xlane.f32.xlu0 %v539
    %v541 = vpop.xlane.xlu0 %540
    %v542 = vsel %vm175, %v536, -inf
    %543 = vmax.xlane.f32.xlu0 %v542
    %v544 = vpop.xlane.xlu0 %543
    %v545 = vsub.f32 %v533, %v541
    %v546 = vsub.f32 %v536, %v544
    %v547 = vmul.f32 %v545, 1.442695
    %v548 = vpow.pop %v547
    %v549 = vmul.f32 %v546, 1.442695
    %v550 = vpow.pop %v549
    %v551 = vsel %vm175, %v548, 0.0
    %552 = vadd.xlane.f32.xlu0 %v551
    %v553 = vpop.xlane.xlu0 %552
    %v554 = vsel %vm175, %v550, 0.0
    %555 = vadd.xlane.f32.xlu0 %v554
    %v556 = vpop.xlane.xlu0 %555
    %v557 = vrcp.pop %v553
    %v558 = vrcp.pop %v556
    %v559 = vmul.f32 %v548, %v557
    %v560 = vmul.f32 %v550, %v558
    %v561 = vpack.c.bf16 %v560, %v559
    %562 = vrot.lane.b32.xlu0 %v123, 40
    %v563 = vpop.permute.xlu0 %562
    %v566 = vsel %vm175, %v561, 0
    %568 = vmatprep.subr.bf16.mxu0 0
    %569 = vmatpush1.bf16.msra.mxu0 0
    %570 = vmatprep.subr.bf16.mxu0 0
    %571 = vmatpush1.bf16.msra.mxu0 0
    %572 = vmatprep.subr.bf16.mxu0 0
    %573 = vmatpush1.bf16.msra.mxu0 0
    %574 = vmatprep.subr.bf16.mxu0 0
    %575 = vmatpush1.bf16.msra.mxu0 0
    %576 = vmatprep.subr.bf16.mxu0 0
    %577 = vmatpush1.bf16.msra.mxu0 0
    %578 = vmatprep.subr.bf16.mxu0 0
    %579 = vmatpush1.bf16.msra.mxu0 0
    %580 = vmatprep.subr.bf16.mxu0 0
    %581 = vmatpush1.bf16.msra.mxu0 0
    %582 = vmatprep.subr.bf16.mxu0 0
    %583 = vmatpush1.bf16.msra.mxu0 %v563
    %584 = vmatprep.subr.bf16.mxu0 0
    %585 = vmatpush2.bf16.msra.mxu0 0
    %586 = vmatprep.subr.bf16.mxu0 0
    %587 = vmatpush2.bf16.msra.mxu0 0
    %588 = vmatprep.subr.bf16.mxu0 0
    %589 = vmatpush2.bf16.msra.mxu0 0
    %590 = vmatprep.subr.bf16.mxu0 0
    %591 = vmatpush2.bf16.msra.mxu0 0
    %592 = vmatprep.subr.bf16.mxu0 0
    %593 = vmatpush2.bf16.msra.mxu0 0
    %594 = vmatprep.subr.bf16.mxu0 0
    %595 = vmatpush2.bf16.msra.mxu0 0
    %596 = vmatprep.subr.bf16.mxu0 0
    %597 = vmatpush2.bf16.msra.mxu0 0
    %598 = vmatprep.subr.bf16.mxu0 0
    %599 = vmatpush2.bf16.msra.mxu0 0
    %600 = vmatprep.mubr.bf16.mxu0 0
    %601 = vmatmul.mubr.bf16.gmra.mxu0 %v566
    %v602 = vpop.f32.mrf.mxu0
    %v603 = vadd.f32 0.0, %v602
    %v604 = vpop.f32.mrf.mxu0
    %v605 = vpop.f32.mrf.mxu0
    %v606 = vadd.f32 0.0, %v605
    %v607 = vpop.f32.mrf.mxu0
    %608 = vdwg.mxu0
    %611 = vrot.lane.b32.xlu0 %v361, 8
    %v612 = vpop.permute.xlu0 %611
    %613 = vrot.lane.b32.xlu0 %v364, 8
    %v614 = vpop.permute.xlu0 %613
    %619 = vrot.lane.b32.xlu0 %v482, 16
    %v620 = vpop.permute.xlu0 %619
    %621 = vrot.lane.b32.xlu0 %v485, 16
    %v622 = vpop.permute.xlu0 %621
    %627 = vrot.lane.b32.xlu0 %v603, 24
    %v628 = vpop.permute.xlu0 %627
    %629 = vrot.lane.b32.xlu0 %v606, 24
    %v630 = vpop.permute.xlu0 %629
    %v633 = vsel %vm127, %v240, %v612
    %v634 = vsel %vm127, %v243, %v614
    %v635 = vsel %vm175, %v633, %v620
    %v636 = vsel %vm175, %v634, %v622
    %vm637 = vcmask 195584
    %v638 = vsel %vm637, %v635, %v628
    %v639 = vsel %vm637, %v636, %v630
    %v640 = vpack.c.bf16 %v639, %v638
    %v641 = vld [vmem:[%s4] sm:$0xf]
    %v642 = vld [vmem:[%s4 + $0x4] sm:$0xf]
    %v643 = vld [vmem:[%s4 + $0x8] sm:$0xf]
    %v644 = vld [vmem:[%s4 + $0xc] sm:$0xf]
    %v645 = vlaneseq
    %v646 = vshrl.u32 %v645, 7
    %v647 = vsub.s32 1, %v646
    %v648 = vrot.slane %v56, %v647
    %v653 = vunpack.c.l.b16 %v641
    %v654 = vunpack.c.l.b16 %v642
    %v655 = vunpack.c.l.b16 %v643
    %v656 = vunpack.c.l.b16 %v644
    %v657 = vpack.c.b16 %v654, %v653
    %v658 = vpack.c.b16 %v656, %v655
    %v662 = vsel %vm78, %v640, 0
    %664 = vmatprep.subr.bf16.mxu0 0
    %665 = vmatpush1.bf16.msra.mxu0 0
    %666 = vmatprep.subr.bf16.mxu0 0
    %667 = vmatpush1.bf16.msra.mxu0 0
    %668 = vmatprep.subr.bf16.mxu0 0
    %669 = vmatpush1.bf16.msra.mxu0 0
    %670 = vmatprep.subr.bf16.mxu0 0
    %671 = vmatpush1.bf16.msra.mxu0 0
    %672 = vmatprep.subr.bf16.mxu0 0
    %673 = vmatpush1.bf16.msra.mxu0 0
    %674 = vmatprep.subr.bf16.mxu0 0
    %675 = vmatpush1.bf16.msra.mxu0 0
    %676 = vmatprep.subr.bf16.mxu0 0
    %677 = vmatpush1.bf16.msra.mxu0 %v658
    %678 = vmatprep.subr.bf16.mxu0 0
    %679 = vmatpush1.bf16.msra.mxu0 %v657
    %680 = vmatprep.subr.bf16.mxu0 0
    %681 = vmatpush2.bf16.msra.mxu0 0
    %682 = vmatprep.subr.bf16.mxu0 0
    %683 = vmatpush2.bf16.msra.mxu0 0
    %684 = vmatprep.subr.bf16.mxu0 0
    %685 = vmatpush2.bf16.msra.mxu0 0
    %686 = vmatprep.subr.bf16.mxu0 0
    %687 = vmatpush2.bf16.msra.mxu0 0
    %688 = vmatprep.subr.bf16.mxu0 0
    %689 = vmatpush2.bf16.msra.mxu0 0
    %690 = vmatprep.subr.bf16.mxu0 0
    %691 = vmatpush2.bf16.msra.mxu0 0
    %692 = vmatprep.subr.bf16.mxu0 0
    %693 = vmatpush2.bf16.msra.mxu0 0
    %694 = vmatprep.subr.bf16.mxu0 0
    %695 = vmatpush2.bf16.msra.mxu0 0
    %696 = vmatprep.mubr.bf16.mxu0 0
    %697 = vmatmul.mubr.bf16.gmra.mxu0 %v662
    %v698 = vpop.f32.mrf.mxu0
    %v699 = vadd.f32 %v648, %v698
    %v700 = vpop.f32.mrf.mxu0
    %v701 = vpop.f32.mrf.mxu0
    %v702 = vadd.f32 %v648, %v701
    %v703 = vpop.f32.mrf.mxu0
    %704 = vdwg.mxu0
    %v705 = vadd.f32 %v54, %v699
    %v706 = vadd.f32 %v55, %v702
    %v707 = vsel %vm78, %v705, 0.0
    %708 = vadd.xlane.f32.xlu0 %v707
    %v709 = vpop.xlane.xlu0 %708
    %v710 = vsel %vm78, %v706, 0.0
    %711 = vadd.xlane.f32.xlu0 %v710
    %v712 = vpop.xlane.xlu0 %711
    %v713 = vrcp.pop 32.0
    %v714 = vmul.f32 %v709, %v713
    %v715 = vmul.f32 %v712, %v713
    %v716 = vsub.f32 %v705, %v714
    %v717 = vsub.f32 %v706, %v715
    %v718 = vmul.f32 %v716, %v716
    %v719 = vmul.f32 %v717, %v717
    %v720 = vsel %vm78, %v718, 0.0
    %721 = vadd.xlane.f32.xlu0 %v720
    %v722 = vpop.xlane.xlu0 %721
    %v723 = vsel %vm78, %v719, 0.0
    %724 = vadd.xlane.f32.xlu0 %v723
    %v725 = vpop.xlane.xlu0 %724
    %v726 = vmul.f32 %v722, %v713
    %v727 = vmul.f32 %v725, %v713
    %v728 = vadd.f32 %v726, 1e-12
    %v729 = vadd.f32 %v727, 1e-12
    %v730 = vrsqrt.pop %v728
    %v731 = vrsqrt.pop %v729
    %v732 = vmul.f32 %v716, %v730
    %v733 = vmul.f32 %v717, %v731
    %v734 = vlaneseq
    %v735 = vshrl.u32 %v734, 7
    %v736 = vsub.s32 2, %v735
    %v737 = vrot.slane %v56, %v736
    %v738 = vmul.f32 %v732, %v737
    %v739 = vmul.f32 %v733, %v737
    %v740 = vlaneseq
    %v741 = vshrl.u32 %v740, 7
    %v742 = vsub.s32 3, %v741
    %v743 = vrot.slane %v56, %v742
    %v744 = vadd.f32 %v738, %v743
    %v745 = vadd.f32 %v739, %v743
    %v746 = vpack.c.bf16 %v745, %v744
    %v747 = vld [vmem:[%s5] sm:$0xf]
    %v748 = vld [vmem:[%s5 + $0x4] sm:$0xf]
    %v749 = vld [vmem:[%s5 + $0x8] sm:$0xf]
    %v750 = vld [vmem:[%s5 + $0xc] sm:$0xf]
    %v751 = vlaneseq
    %v752 = vshrl.u32 %v751, 7
    %v753 = vsub.s32 4, %v752
    %v754 = vrot.slane %v56, %v753
    %v759 = vunpack.c.l.b16 %v747
    %v760 = vunpack.c.l.b16 %v748
    %v761 = vunpack.c.l.b16 %v749
    %v762 = vunpack.c.l.b16 %v750
    %v763 = vpack.c.b16 %v760, %v759
    %v764 = vpack.c.b16 %v762, %v761
    %v768 = vsel %vm78, %v746, 0
    %770 = vmatprep.subr.bf16.mxu0 0
    %771 = vmatpush1.bf16.msra.mxu0 0
    %772 = vmatprep.subr.bf16.mxu0 0
    %773 = vmatpush1.bf16.msra.mxu0 0
    %774 = vmatprep.subr.bf16.mxu0 0
    %775 = vmatpush1.bf16.msra.mxu0 0
    %776 = vmatprep.subr.bf16.mxu0 0
    %777 = vmatpush1.bf16.msra.mxu0 0
    %778 = vmatprep.subr.bf16.mxu0 0
    %779 = vmatpush1.bf16.msra.mxu0 0
    %780 = vmatprep.subr.bf16.mxu0 0
    %781 = vmatpush1.bf16.msra.mxu0 0
    %782 = vmatprep.subr.bf16.mxu0 0
    %783 = vmatpush1.bf16.msra.mxu0 %v764
    %784 = vmatprep.subr.bf16.mxu0 0
    %785 = vmatpush1.bf16.msra.mxu0 %v763
    %786 = vmatprep.subr.bf16.mxu0 0
    %787 = vmatpush2.bf16.msra.mxu0 0
    %788 = vmatprep.subr.bf16.mxu0 0
    %789 = vmatpush2.bf16.msra.mxu0 0
    %790 = vmatprep.subr.bf16.mxu0 0
    %791 = vmatpush2.bf16.msra.mxu0 0
    %792 = vmatprep.subr.bf16.mxu0 0
    %793 = vmatpush2.bf16.msra.mxu0 0
    %794 = vmatprep.subr.bf16.mxu0 0
    %795 = vmatpush2.bf16.msra.mxu0 0
    %796 = vmatprep.subr.bf16.mxu0 0
    %797 = vmatpush2.bf16.msra.mxu0 0
    %798 = vmatprep.subr.bf16.mxu0 0
    %799 = vmatpush2.bf16.msra.mxu0 0
    %800 = vmatprep.subr.bf16.mxu0 0
    %801 = vmatpush2.bf16.msra.mxu0 0
    %802 = vmatprep.mubr.bf16.mxu0 0
    %803 = vmatmul.mubr.bf16.gmra.mxu0 %v768
    %v804 = vpop.f32.mrf.mxu0
    %v805 = vadd.f32 %v754, %v804
    %v806 = vpop.f32.mrf.mxu0
    %v807 = vpop.f32.mrf.mxu0
    %v808 = vadd.f32 %v754, %v807
    %v809 = vpop.f32.mrf.mxu0
    %810 = vdwg.mxu0
    %v811 = vmul.f32 %v805, 0.5
    %v812 = vmul.f32 %v808, 0.5
    %v813 = vmul.f32 %v805, 0.044715
    %v814 = vmul.f32 %v808, 0.044715
    %v815 = vmul.f32 %v813, %v805
    %v816 = vmul.f32 %v814, %v808
    %v817 = vmul.f32 %v815, %v805
    %v818 = vmul.f32 %v816, %v808
    %v819 = vadd.f32 %v805, %v817
    %v820 = vadd.f32 %v808, %v818
    %v821 = vmul.f32 %v819, 0.7978846
    %v822 = vmul.f32 %v820, 0.7978846
    %v823 = vtanh.pop %v821
    %v824 = vtanh.pop %v822
    %v825 = vadd.f32 %v823, 1.0
    %v826 = vadd.f32 %v824, 1.0
    %v827 = vmul.f32 %v811, %v825
    %v828 = vmul.f32 %v812, %v826
    %v829 = vpack.c.bf16 %v828, %v827
    %v830 = vld [vmem:[%s6] sm:$0xf]
    %v831 = vld [vmem:[%s6 + $0x4] sm:$0xf]
    %v832 = vld [vmem:[%s6 + $0x8] sm:$0xf]
    %v833 = vld [vmem:[%s6 + $0xc] sm:$0xf]
    %v834 = vld [vmem:[%s6 + $0x10] sm:$0xf]
    %v835 = vld [vmem:[%s6 + $0x14] sm:$0xf]
    %v836 = vld [vmem:[%s6 + $0x18] sm:$0xf]
    %v837 = vld [vmem:[%s6 + $0x1c] sm:$0xf]
    %v838 = vld [vmem:[%s6 + $0x20] sm:$0xf]
    %v839 = vld [vmem:[%s6 + $0x24] sm:$0xf]
    %v840 = vld [vmem:[%s6 + $0x28] sm:$0xf]
    %v841 = vld [vmem:[%s6 + $0x2c] sm:$0xf]
    %v842 = vld [vmem:[%s6 + $0x30] sm:$0xf]
    %v843 = vld [vmem:[%s6 + $0x34] sm:$0xf]
    %v844 = vld [vmem:[%s6 + $0x38] sm:$0xf]
    %v845 = vld [vmem:[%s6 + $0x3c] sm:$0xf]
    %v846 = vlaneseq
    %v847 = vshrl.u32 %v846, 7
    %v848 = vsub.s32 5, %v847
    %v849 = vrot.slane %v56, %v848
    %v866 = vunpack.c.l.b16 %v830
    %v867 = vunpack.c.l.b16 %v831
    %v868 = vunpack.c.l.b16 %v832
    %v869 = vunpack.c.l.b16 %v833
    %v870 = vunpack.c.l.b16 %v834
    %v871 = vunpack.c.l.b16 %v835
    %v872 = vunpack.c.l.b16 %v836
    %v873 = vunpack.c.l.b16 %v837
    %v874 = vunpack.c.l.b16 %v838
    %v875 = vunpack.c.l.b16 %v839
    %v876 = vunpack.c.l.b16 %v840
    %v877 = vunpack.c.l.b16 %v841
    %v878 = vunpack.c.l.b16 %v842
    %v879 = vunpack.c.l.b16 %v843
    %v880 = vunpack.c.l.b16 %v844
    %v881 = vunpack.c.l.b16 %v845
    %v882 = vpack.c.b16 %v867, %v866
    %v883 = vpack.c.b16 %v869, %v868
    %v884 = vpack.c.b16 %v871, %v870
    %v885 = vpack.c.b16 %v873, %v872
    %v886 = vpack.c.b16 %v875, %v874
    %v887 = vpack.c.b16 %v877, %v876
    %v888 = vpack.c.b16 %v879, %v878
    %v889 = vpack.c.b16 %v881, %v880
    %898 = vmatprep.subr.bf16.mxu0 0
    %899 = vmatpush1.bf16.msra.mxu0 %v889
    %900 = vmatprep.subr.bf16.mxu0 0
    %901 = vmatpush1.bf16.msra.mxu0 %v888
    %902 = vmatprep.subr.bf16.mxu0 0
    %903 = vmatpush1.bf16.msra.mxu0 %v887
    %904 = vmatprep.subr.bf16.mxu0 0
    %905 = vmatpush1.bf16.msra.mxu0 %v886
    %906 = vmatprep.subr.bf16.mxu0 0
    %907 = vmatpush1.bf16.msra.mxu0 %v885
    %908 = vmatprep.subr.bf16.mxu0 0
    %909 = vmatpush1.bf16.msra.mxu0 %v884
    %910 = vmatprep.subr.bf16.mxu0 0
    %911 = vmatpush1.bf16.msra.mxu0 %v883
    %912 = vmatprep.subr.bf16.mxu0 0
    %913 = vmatpush1.bf16.msra.mxu0 %v882
    %914 = vmatprep.subr.bf16.mxu0 0
    %915 = vmatpush2.bf16.msra.mxu0 0
    %916 = vmatprep.subr.bf16.mxu0 0
    %917 = vmatpush2.bf16.msra.mxu0 0
    %918 = vmatprep.subr.bf16.mxu0 0
    %919 = vmatpush2.bf16.msra.mxu0 0
    %920 = vmatprep.subr.bf16.mxu0 0
    %921 = vmatpush2.bf16.msra.mxu0 0
    %922 = vmatprep.subr.bf16.mxu0 0
    %923 = vmatpush2.bf16.msra.mxu0 0
    %924 = vmatprep.subr.bf16.mxu0 0
    %925 = vmatpush2.bf16.msra.mxu0 0
    %926 = vmatprep.subr.bf16.mxu0 0
    %927 = vmatpush2.bf16.msra.mxu0 0
    %928 = vmatprep.subr.bf16.mxu0 0
    %929 = vmatpush2.bf16.msra.mxu0 0
    %930 = vmatprep.mubr.bf16.mxu0 0
    %931 = vmatmul.mubr.bf16.gmra.mxu0 %v829
    %v932 = vpop.f32.mrf.mxu0
    %v933 = vadd.f32 %v849, %v932
    %v934 = vpop.f32.mrf.mxu0
    %v935 = vpop.f32.mrf.mxu0
    %v936 = vadd.f32 %v849, %v935
    %v937 = vpop.f32.mrf.mxu0
    %938 = vdwg.mxu0
    %v939 = vadd.f32 %v744, %v933
    %v940 = vadd.f32 %v745, %v936
    %v941 = vsel %vm78, %v939, 0.0
    %942 = vadd.xlane.f32.xlu0 %v941
    %v943 = vpop.xlane.xlu0 %942
    %v944 = vsel %vm78, %v940, 0.0
    %945 = vadd.xlane.f32.xlu0 %v944
    %v946 = vpop.xlane.xlu0 %945
    %v947 = vmul.f32 %v943, %v713
    %v948 = vmul.f32 %v946, %v713
    %v949 = vsub.f32 %v939, %v947
    %v950 = vsub.f32 %v940, %v948
    %v951 = vmul.f32 %v949, %v949
    %v952 = vmul.f32 %v950, %v950
    %v953 = vsel %vm78, %v951, 0.0
    %954 = vadd.xlane.f32.xlu0 %v953
    %v955 = vpop.xlane.xlu0 %954
    %v956 = vsel %vm78, %v952, 0.0
    %957 = vadd.xlane.f32.xlu0 %v956
    %v958 = vpop.xlane.xlu0 %957
    %v959 = vmul.f32 %v955, %v713
    %v960 = vmul.f32 %v958, %v713
    %v961 = vadd.f32 %v959, 1e-12
    %v962 = vadd.f32 %v960, 1e-12
    %v963 = vrsqrt.pop %v961
    %v964 = vrsqrt.pop %v962
    %v965 = vmul.f32 %v949, %v963
    %v966 = vmul.f32 %v950, %v964
    %v967 = vlaneseq
    %v968 = vshrl.u32 %v967, 7
    %v969 = vsub.s32 6, %v968
    %v970 = vrot.slane %v56, %v969
    %v971 = vmul.f32 %v965, %v970
    %v972 = vmul.f32 %v966, %v970
    %v973 = vlaneseq
    %v974 = vshrl.u32 %v973, 7
    %v975 = vsub.s32 7, %v974
    %v976 = vrot.slane %v56, %v975
    %v977 = vadd.f32 %v971, %v976
    %v978 = vadd.f32 %v972, %v976
    %s979 = scalar_lea.vmem %s7, 8
    %v980 = vld [vmem:[%s979] sm:$0xff]
    %v981 = vpack.c.bf16 %v978, %v977
    %s982 = scalar_lea.vmem %s3, 16
    %v983 = vld [vmem:[%s982] sm:$0xf]
    %v984 = vld [vmem:[%s982 + $0x4] sm:$0xf]
    %v985 = vld [vmem:[%s982 + $0x8] sm:$0xf]
    %v986 = vld [vmem:[%s982 + $0xc] sm:$0xf]
    %v987 = vlaneseq
    %v988 = vshrl.u32 %v987, 7
    %v989 = vsub.s32 0, %v988
    %v990 = vrot.slane %v980, %v989
    %v995 = vunpack.c.l.b16 %v983
    %v996 = vunpack.c.l.b16 %v984
    %v997 = vunpack.c.l.b16 %v985
    %v998 = vunpack.c.l.b16 %v986
    %v999 = vpack.c.b16 %v996, %v995
    %v1000 = vpack.c.b16 %v998, %v997
    %v1004 = vsel %vm78, %v981, 0
    %1006 = vmatprep.subr.bf16.mxu0 0
    %1007 = vmatpush1.bf16.msra.mxu0 0
    %1008 = vmatprep.subr.bf16.mxu0 0
    %1009 = vmatpush1.bf16.msra.mxu0 0
    %1010 = vmatprep.subr.bf16.mxu0 0
    %1011 = vmatpush1.bf16.msra.mxu0 0
    %1012 = vmatprep.subr.bf16.mxu0 0
    %1013 = vmatpush1.bf16.msra.mxu0 0
    %1014 = vmatprep.subr.bf16.mxu0 0
    %1015 = vmatpush1.bf16.msra.mxu0 0
    %1016 = vmatprep.subr.bf16.mxu0 0
    %1017 = vmatpush1.bf16.msra.mxu0 0
    %1018 = vmatprep.subr.bf16.mxu0 0
    %1019 = vmatpush1.bf16.msra.mxu0 %v1000
    %1020 = vmatprep.subr.bf16.mxu0 0
    %1021 = vmatpush1.bf16.msra.mxu0 %v999
    %1022 = vmatprep.subr.bf16.mxu0 0
    %1023 = vmatpush2.bf16.msra.mxu0 0
    %1024 = vmatprep.subr.bf16.mxu0 0
    %1025 = vmatpush2.bf16.msra.mxu0 0
    %1026 = vmatprep.subr.bf16.mxu0 0
    %1027 = vmatpush2.bf16.msra.mxu0 0
    %1028 = vmatprep.subr.bf16.mxu0 0
    %1029 = vmatpush2.bf16.msra.mxu0 0
    %1030 = vmatprep.subr.bf16.mxu0 0
    %1031 = vmatpush2.bf16.msra.mxu0 0
    %1032 = vmatprep.subr.bf16.mxu0 0
    %1033 = vmatpush2.bf16.msra.mxu0 0
    %1034 = vmatprep.subr.bf16.mxu0 0
    %1035 = vmatpush2.bf16.msra.mxu0 0
    %1036 = vmatprep.subr.bf16.mxu0 0
    %1037 = vmatpush2.bf16.msra.mxu0 0
    %1038 = vmatprep.mubr.bf16.mxu0 0
    %1039 = vmatmul.mubr.bf16.gmra.mxu0 %v1004
    %v1040 = vpop.f32.mrf.mxu0
    %v1041 = vadd.f32 %v990, %v1040
    %v1042 = vpop.f32.mrf.mxu0
    %v1043 = vpop.f32.mrf.mxu0
    %v1044 = vadd.f32 %v990, %v1043
    %v1045 = vpop.f32.mrf.mxu0
    %1046 = vdwg.mxu0
    %v1047 = vpack.c.bf16 %v1044, %v1041
    %1049 = vrot.lane.b32.xlu0 %v1047, 120
    %v1050 = vpop.permute.xlu0 %1049
    %v1052 = vsel %vm127, %v1047, 0
    %v1055 = vsel %vm127, %v1050, 0
    %1057 = vmatprep.subr.bf16.mxu0 0
    %1058 = vmatpush1.bf16.xpose.msra.mxu0 0
    %1059 = vmatprep.subr.bf16.mxu0 0
    %1060 = vmatpush1.bf16.xpose.msra.mxu0 0
    %1061 = vmatprep.subr.bf16.mxu0 0
    %1062 = vmatpush1.bf16.xpose.msra.mxu0 0
    %1063 = vmatprep.subr.bf16.mxu0 0
    %1064 = vmatpush1.bf16.xpose.msra.mxu0 0
    %1065 = vmatprep.subr.bf16.mxu0 0
    %1066 = vmatpush1.bf16.xpose.msra.mxu0 0
    %1067 = vmatprep.subr.bf16.mxu0 0
    %1068 = vmatpush1.bf16.xpose.msra.mxu0 0
    %1069 = vmatprep.subr.bf16.mxu0 0
    %1070 = vmatpush1.bf16.xpose.msra.mxu0 0
    %1071 = vmatprep.subr.bf16.mxu0 0
    %1072 = vmatpush1.bf16.xpose.msra.mxu0 %v1055
    %1073 = vmatprep.subr.bf16.mxu0 0
    %1074 = vmatpush2.bf16.xpose.msra.mxu0 0
    %1075 = vmatprep.subr.bf16.mxu0 0
    %1076 = vmatpush2.bf16.xpose.msra.mxu0 0
    %1077 = vmatprep.subr.bf16.mxu0 0
    %1078 = vmatpush2.bf16.xpose.msra.mxu0 0
    %1079 = vmatprep.subr.bf16.mxu0 0
    %1080 = vmatpush2.bf16.xpose.msra.mxu0 0
    %1081 = vmatprep.subr.bf16.mxu0 0
    %1082 = vmatpush2.bf16.xpose.msra.mxu0 0
    %1083 = vmatprep.subr.bf16.mxu0 0
    %1084 = vmatpush2.bf16.xpose.msra.mxu0 0
    %1085 = vmatprep.subr.bf16.mxu0 0
    %1086 = vmatpush2.bf16.xpose.msra.mxu0 0
    %1087 = vmatprep.subr.bf16.mxu0 0
    %1088 = vmatpush2.bf16.xpose.msra.mxu0 0
    %1089 = vmatprep.mubr.bf16.mxu0 0
    %1090 = vmatmul.mubr.bf16.gmra.mxu0 %v1052
    %v1091 = vpop.f32.mrf.mxu0
    %v1092 = vadd.f32 %v52, %v1091
    %v1093 = vpop.f32.mrf.mxu0
    %v1094 = vpop.f32.mrf.mxu0
    %v1095 = vadd.f32 %v53, %v1094
    %v1096 = vpop.f32.mrf.mxu0
    %1097 = vdwg.mxu0
    %v1098 = vsel %vm175, %v1092, -inf
    %1099 = vmax.xlane.f32.xlu0 %v1098
    %v1100 = vpop.xlane.xlu0 %1099
    %v1101 = vsel %vm175, %v1095, -inf
    %1102 = vmax.xlane.f32.xlu0 %v1101
    %v1103 = vpop.xlane.xlu0 %1102
    %v1104 = vsub.f32 %v1092, %v1100
    %v1105 = vsub.f32 %v1095, %v1103
    %v1106 = vmul.f32 %v1104, 1.442695
    %v1107 = vpow.pop %v1106
    %v1108 = vmul.f32 %v1105, 1.442695
    %v1109 = vpow.pop %v1108
    %v1110 = vsel %vm175, %v1107, 0.0
    %1111 = vadd.xlane.f32.xlu0 %v1110
    %v1112 = vpop.xlane.xlu0 %1111
    %v1113 = vsel %vm175, %v1109, 0.0
    %1114 = vadd.xlane.f32.xlu0 %v1113
    %v1115 = vpop.xlane.xlu0 %1114
    %v1116 = vrcp.pop %v1112
    %v1117 = vrcp.pop %v1115
    %v1118 = vmul.f32 %v1107, %v1116
    %v1119 = vmul.f32 %v1109, %v1117
    %v1120 = vpack.c.bf16 %v1119, %v1118
    %1121 = vrot.lane.b32.xlu0 %v1047, 112
    %v1122 = vpop.permute.xlu0 %1121
    %v1125 = vsel %vm175, %v1120, 0
    %1127 = vmatprep.subr.bf16.mxu0 0
    %1128 = vmatpush1.bf16.msra.mxu0 0
    %1129 = vmatprep.subr.bf16.mxu0 0
    %1130 = vmatpush1.bf16.msra.mxu0 0
    %1131 = vmatprep.subr.bf16.mxu0 0
    %1132 = vmatpush1.bf16.msra.mxu0 0
    %1133 = vmatprep.subr.bf16.mxu0 0
    %1134 = vmatpush1.bf16.msra.mxu0 0
    %1135 = vmatprep.subr.bf16.mxu0 0
    %1136 = vmatpush1.bf16.msra.mxu0 0
    %1137 = vmatprep.subr.bf16.mxu0 0
    %1138 = vmatpush1.bf16.msra.mxu0 0
    %1139 = vmatprep.subr.bf16.mxu0 0
    %1140 = vmatpush1.bf16.msra.mxu0 0
    %1141 = vmatprep.subr.bf16.mxu0 0
    %1142 = vmatpush1.bf16.msra.mxu0 %v1122
    %1143 = vmatprep.subr.bf16.mxu0 0
    %1144 = vmatpush2.bf16.msra.mxu0 0
    %1145 = vmatprep.subr.bf16.mxu0 0
    %1146 = vmatpush2.bf16.msra.mxu0 0
    %1147 = vmatprep.subr.bf16.mxu0 0
    %1148 = vmatpush2.bf16.msra.mxu0 0
    %1149 = vmatprep.subr.bf16.mxu0 0
    %1150 = vmatpush2.bf16.msra.mxu0 0
    %1151 = vmatprep.subr.bf16.mxu0 0
    %1152 = vmatpush2.bf16.msra.mxu0 0
    %1153 = vmatprep.subr.bf16.mxu0 0
    %1154 = vmatpush2.bf16.msra.mxu0 0
    %1155 = vmatprep.subr.bf16.mxu0 0
    %1156 = vmatpush2.bf16.msra.mxu0 0
    %1157 = vmatprep.subr.bf16.mxu0 0
    %1158 = vmatpush2.bf16.msra.mxu0 0
    %1159 = vmatprep.mubr.bf16.mxu0 0
    %1160 = vmatmul.mubr.bf16.gmra.mxu0 %v1125
    %v1161 = vpop.f32.mrf.mxu0
    %v1162 = vadd.f32 0.0, %v1161
    %v1163 = vpop.f32.mrf.mxu0
    %v1164 = vpop.f32.mrf.mxu0
    %v1165 = vadd.f32 0.0, %v1164
    %v1166 = vpop.f32.mrf.mxu0
    %1167 = vdwg.mxu0
    %1168 = vrot.lane.b32.xlu0 %v1047, 104
    %v1169 = vpop.permute.xlu0 %1168
    %1170 = vrot.lane.b32.xlu0 %v1047, 96
    %v1171 = vpop.permute.xlu0 %1170
    %v1173 = vsel %vm127, %v1169, 0
    %v1176 = vsel %vm127, %v1171, 0
    %1178 = vmatprep.subr.bf16.mxu0 0
    %1179 = vmatpush1.bf16.xpose.msra.mxu0 0
    %1180 = vmatprep.subr.bf16.mxu0 0
    %1181 = vmatpush1.bf16.xpose.msra.mxu0 0
    %1182 = vmatprep.subr.bf16.mxu0 0
    %1183 = vmatpush1.bf16.xpose.msra.mxu0 0
    %1184 = vmatprep.subr.bf16.mxu0 0
    %1185 = vmatpush1.bf16.xpose.msra.mxu0 0
    %1186 = vmatprep.subr.bf16.mxu0 0
    %1187 = vmatpush1.bf16.xpose.msra.mxu0 0
    %1188 = vmatprep.subr.bf16.mxu0 0
    %1189 = vmatpush1.bf16.xpose.msra.mxu0 0
    %1190 = vmatprep.subr.bf16.mxu0 0
    %1191 = vmatpush1.bf16.xpose.msra.mxu0 0
    %1192 = vmatprep.subr.bf16.mxu0 0
    %1193 = vmatpush1.bf16.xpose.msra.mxu0 %v1176
    %1194 = vmatprep.subr.bf16.mxu0 0
    %1195 = vmatpush2.bf16.xpose.msra.mxu0 0
    %1196 = vmatprep.subr.bf16.mxu0 0
    %1197 = vmatpush2.bf16.xpose.msra.mxu0 0
    %1198 = vmatprep.subr.bf16.mxu0 0
    %1199 = vmatpush2.bf16.xpose.msra.mxu0 0
    %1200 = vmatprep.subr.bf16.mxu0 0
    %1201 = vmatpush2.bf16.xpose.msra.mxu0 0
    %1202 = vmatprep.subr.bf16.mxu0 0
    %1203 = vmatpush2.bf16.xpose.msra.mxu0 0
    %1204 = vmatprep.subr.bf16.mxu0 0
    %1205 = vmatpush2.bf16.xpose.msra.mxu0 0
    %1206 = vmatprep.subr.bf16.mxu0 0
    %1207 = vmatpush2.bf16.xpose.msra.mxu0 0
    %1208 = vmatprep.subr.bf16.mxu0 0
    %1209 = vmatpush2.bf16.xpose.msra.mxu0 0
    %1210 = vmatprep.mubr.bf16.mxu0 0
    %1211 = vmatmul.mubr.bf16.gmra.mxu0 %v1173
    %v1212 = vpop.f32.mrf.mxu0
    %v1213 = vadd.f32 %v52, %v1212
    %v1214 = vpop.f32.mrf.mxu0
    %v1215 = vpop.f32.mrf.mxu0
    %v1216 = vadd.f32 %v53, %v1215
    %v1217 = vpop.f32.mrf.mxu0
    %1218 = vdwg.mxu0
    %v1219 = vsel %vm175, %v1213, -inf
    %1220 = vmax.xlane.f32.xlu0 %v1219
    %v1221 = vpop.xlane.xlu0 %1220
    %v1222 = vsel %vm175, %v1216, -inf
    %1223 = vmax.xlane.f32.xlu0 %v1222
    %v1224 = vpop.xlane.xlu0 %1223
    %v1225 = vsub.f32 %v1213, %v1221
    %v1226 = vsub.f32 %v1216, %v1224
    %v1227 = vmul.f32 %v1225, 1.442695
    %v1228 = vpow.pop %v1227
    %v1229 = vmul.f32 %v1226, 1.442695
    %v1230 = vpow.pop %v1229
    %v1231 = vsel %vm175, %v1228, 0.0
    %1232 = vadd.xlane.f32.xlu0 %v1231
    %v1233 = vpop.xlane.xlu0 %1232
    %v1234 = vsel %vm175, %v1230, 0.0
    %1235 = vadd.xlane.f32.xlu0 %v1234
    %v1236 = vpop.xlane.xlu0 %1235
    %v1237 = vrcp.pop %v1233
    %v1238 = vrcp.pop %v1236
    %v1239 = vmul.f32 %v1228, %v1237
    %v1240 = vmul.f32 %v1230, %v1238
    %v1241 = vpack.c.bf16 %v1240, %v1239
    %1242 = vrot.lane.b32.xlu0 %v1047, 88
    %v1243 = vpop.permute.xlu0 %1242
    %v1246 = vsel %vm175, %v1241, 0
    %1248 = vmatprep.subr.bf16.mxu0 0
    %1249 = vmatpush1.bf16.msra.mxu0 0
    %1250 = vmatprep.subr.bf16.mxu0 0
    %1251 = vmatpush1.bf16.msra.mxu0 0
    %1252 = vmatprep.subr.bf16.mxu0 0
    %1253 = vmatpush1.bf16.msra.mxu0 0
    %1254 = vmatprep.subr.bf16.mxu0 0
    %1255 = vmatpush1.bf16.msra.mxu0 0
    %1256 = vmatprep.subr.bf16.mxu0 0
    %1257 = vmatpush1.bf16.msra.mxu0 0
    %1258 = vmatprep.subr.bf16.mxu0 0
    %1259 = vmatpush1.bf16.msra.mxu0 0
    %1260 = vmatprep.subr.bf16.mxu0 0
    %1261 = vmatpush1.bf16.msra.mxu0 0
    %1262 = vmatprep.subr.bf16.mxu0 0
    %1263 = vmatpush1.bf16.msra.mxu0 %v1243
    %1264 = vmatprep.subr.bf16.mxu0 0
    %1265 = vmatpush2.bf16.msra.mxu0 0
    %1266 = vmatprep.subr.bf16.mxu0 0
    %1267 = vmatpush2.bf16.msra.mxu0 0
    %1268 = vmatprep.subr.bf16.mxu0 0
    %1269 = vmatpush2.bf16.msra.mxu0 0
    %1270 = vmatprep.subr.bf16.mxu0 0
    %1271 = vmatpush2.bf16.msra.mxu0 0
    %1272 = vmatprep.subr.bf16.mxu0 0
    %1273 = vmatpush2.bf16.msra.mxu0 0
    %1274 = vmatprep.subr.bf16.mxu0 0
    %1275 = vmatpush2.bf16.msra.mxu0 0
    %1276 = vmatprep.subr.bf16.mxu0 0
    %1277 = vmatpush2.bf16.msra.mxu0 0
    %1278 = vmatprep.subr.bf16.mxu0 0
    %1279 = vmatpush2.bf16.msra.mxu0 0
    %1280 = vmatprep.mubr.bf16.mxu0 0
    %1281 = vmatmul.mubr.bf16.gmra.mxu0 %v1246
    %v1282 = vpop.f32.mrf.mxu0
    %v1283 = vadd.f32 0.0, %v1282
    %v1284 = vpop.f32.mrf.mxu0
    %v1285 = vpop.f32.mrf.mxu0
    %v1286 = vadd.f32 0.0, %v1285
    %v1287 = vpop.f32.mrf.mxu0
    %1288 = vdwg.mxu0
    %1289 = vrot.lane.b32.xlu0 %v1047, 80
    %v1290 = vpop.permute.xlu0 %1289
    %1291 = vrot.lane.b32.xlu0 %v1047, 72
    %v1292 = vpop.permute.xlu0 %1291
    %v1294 = vsel %vm127, %v1290, 0
    %v1297 = vsel %vm127, %v1292, 0
    %1299 = vmatprep.subr.bf16.mxu0 0
    %1300 = vmatpush1.bf16.xpose.msra.mxu0 0
    %1301 = vmatprep.subr.bf16.mxu0 0
    %1302 = vmatpush1.bf16.xpose.msra.mxu0 0
    %1303 = vmatprep.subr.bf16.mxu0 0
    %1304 = vmatpush1.bf16.xpose.msra.mxu0 0
    %1305 = vmatprep.subr.bf16.mxu0 0
    %1306 = vmatpush1.bf16.xpose.msra.mxu0 0
    %1307 = vmatprep.subr.bf16.mxu0 0
    %1308 = vmatpush1.bf16.xpose.msra.mxu0 0
    %1309 = vmatprep.subr.bf16.mxu0 0
    %1310 = vmatpush1.bf16.xpose.msra.mxu0 0
    %1311 = vmatprep.subr.bf16.mxu0 0
    %1312 = vmatpush1.bf16.xpose.msra.mxu0 0
    %1313 = vmatprep.subr.bf16.mxu0 0
    %1314 = vmatpush1.bf16.xpose.msra.mxu0 %v1297
    %1315 = vmatprep.subr.bf16.mxu0 0
    %1316 = vmatpush2.bf16.xpose.msra.mxu0 0
    %1317 = vmatprep.subr.bf16.mxu0 0
    %1318 = vmatpush2.bf16.xpose.msra.mxu0 0
    %1319 = vmatprep.subr.bf16.mxu0 0
    %1320 = vmatpush2.bf16.xpose.msra.mxu0 0
    %1321 = vmatprep.subr.bf16.mxu0 0
    %1322 = vmatpush2.bf16.xpose.msra.mxu0 0
    %1323 = vmatprep.subr.bf16.mxu0 0
    %1324 = vmatpush2.bf16.xpose.msra.mxu0 0
    %1325 = vmatprep.subr.bf16.mxu0 0
    %1326 = vmatpush2.bf16.xpose.msra.mxu0 0
    %1327 = vmatprep.subr.bf16.mxu0 0
    %1328 = vmatpush2.bf16.xpose.msra.mxu0 0
    %1329 = vmatprep.subr.bf16.mxu0 0
    %1330 = vmatpush2.bf16.xpose.msra.mxu0 0
    %1331 = vmatprep.mubr.bf16.mxu0 0
    %1332 = vmatmul.mubr.bf16.gmra.mxu0 %v1294
    %v1333 = vpop.f32.mrf.mxu0
    %v1334 = vadd.f32 %v52, %v1333
    %v1335 = vpop.f32.mrf.mxu0
    %v1336 = vpop.f32.mrf.mxu0
    %v1337 = vadd.f32 %v53, %v1336
    %v1338 = vpop.f32.mrf.mxu0
    %1339 = vdwg.mxu0
    %v1340 = vsel %vm175, %v1334, -inf
    %1341 = vmax.xlane.f32.xlu0 %v1340
    %v1342 = vpop.xlane.xlu0 %1341
    %v1343 = vsel %vm175, %v1337, -inf
    %1344 = vmax.xlane.f32.xlu0 %v1343
    %v1345 = vpop.xlane.xlu0 %1344
    %v1346 = vsub.f32 %v1334, %v1342
    %v1347 = vsub.f32 %v1337, %v1345
    %v1348 = vmul.f32 %v1346, 1.442695
    %v1349 = vpow.pop %v1348
    %v1350 = vmul.f32 %v1347, 1.442695
    %v1351 = vpow.pop %v1350
    %v1352 = vsel %vm175, %v1349, 0.0
    %1353 = vadd.xlane.f32.xlu0 %v1352
    %v1354 = vpop.xlane.xlu0 %1353
    %v1355 = vsel %vm175, %v1351, 0.0
    %1356 = vadd.xlane.f32.xlu0 %v1355
    %v1357 = vpop.xlane.xlu0 %1356
    %v1358 = vrcp.pop %v1354
    %v1359 = vrcp.pop %v1357
    %v1360 = vmul.f32 %v1349, %v1358
    %v1361 = vmul.f32 %v1351, %v1359
    %v1362 = vpack.c.bf16 %v1361, %v1360
    %1363 = vrot.lane.b32.xlu0 %v1047, 64
    %v1364 = vpop.permute.xlu0 %1363
    %v1367 = vsel %vm175, %v1362, 0
    %1369 = vmatprep.subr.bf16.mxu0 0
    %1370 = vmatpush1.bf16.msra.mxu0 0
    %1371 = vmatprep.subr.bf16.mxu0 0
    %1372 = vmatpush1.bf16.msra.mxu0 0
    %1373 = vmatprep.subr.bf16.mxu0 0
    %1374 = vmatpush1.bf16.msra.mxu0 0
    %1375 = vmatprep.subr.bf16.mxu0 0
    %1376 = vmatpush1.bf16.msra.mxu0 0
    %1377 = vmatprep.subr.bf16.mxu0 0
    %1378 = vmatpush1.bf16.msra.mxu0 0
    %1379 = vmatprep.subr.bf16.mxu0 0
    %1380 = vmatpush1.bf16.msra.mxu0 0
    %1381 = vmatprep.subr.bf16.mxu0 0
    %1382 = vmatpush1.bf16.msra.mxu0 0
    %1383 = vmatprep.subr.bf16.mxu0 0
    %1384 = vmatpush1.bf16.msra.mxu0 %v1364
    %1385 = vmatprep.subr.bf16.mxu0 0
    %1386 = vmatpush2.bf16.msra.mxu0 0
    %1387 = vmatprep.subr.bf16.mxu0 0
    %1388 = vmatpush2.bf16.msra.mxu0 0
    %1389 = vmatprep.subr.bf16.mxu0 0
    %1390 = vmatpush2.bf16.msra.mxu0 0
    %1391 = vmatprep.subr.bf16.mxu0 0
    %1392 = vmatpush2.bf16.msra.mxu0 0
    %1393 = vmatprep.subr.bf16.mxu0 0
    %1394 = vmatpush2.bf16.msra.mxu0 0
    %1395 = vmatprep.subr.bf16.mxu0 0
    %1396 = vmatpush2.bf16.msra.mxu0 0
    %1397 = vmatprep.subr.bf16.mxu0 0
    %1398 = vmatpush2.bf16.msra.mxu0 0
    %1399 = vmatprep.subr.bf16.mxu0 0
    %1400 = vmatpush2.bf16.msra.mxu0 0
    %1401 = vmatprep.mubr.bf16.mxu0 0
    %1402 = vmatmul.mubr.bf16.gmra.mxu0 %v1367
    %v1403 = vpop.f32.mrf.mxu0
    %v1404 = vadd.f32 0.0, %v1403
    %v1405 = vpop.f32.mrf.mxu0
    %v1406 = vpop.f32.mrf.mxu0
    %v1407 = vadd.f32 0.0, %v1406
    %v1408 = vpop.f32.mrf.mxu0
    %1409 = vdwg.mxu0
    %1410 = vrot.lane.b32.xlu0 %v1047, 56
    %v1411 = vpop.permute.xlu0 %1410
    %1412 = vrot.lane.b32.xlu0 %v1047, 48
    %v1413 = vpop.permute.xlu0 %1412
    %v1415 = vsel %vm127, %v1411, 0
    %v1418 = vsel %vm127, %v1413, 0
    %1420 = vmatprep.subr.bf16.mxu0 0
    %1421 = vmatpush1.bf16.xpose.msra.mxu0 0
    %1422 = vmatprep.subr.bf16.mxu0 0
    %1423 = vmatpush1.bf16.xpose.msra.mxu0 0
    %1424 = vmatprep.subr.bf16.mxu0 0
    %1425 = vmatpush1.bf16.xpose.msra.mxu0 0
    %1426 = vmatprep.subr.bf16.mxu0 0
    %1427 = vmatpush1.bf16.xpose.msra.mxu0 0
    %1428 = vmatprep.subr.bf16.mxu0 0
    %1429 = vmatpush1.bf16.xpose.msra.mxu0 0
    %1430 = vmatprep.subr.bf16.mxu0 0
    %1431 = vmatpush1.bf16.xpose.msra.mxu0 0
    %1432 = vmatprep.subr.bf16.mxu0 0
    %1433 = vmatpush1.bf16.xpose.msra.mxu0 0
    %1434 = vmatprep.subr.bf16.mxu0 0
    %1435 = vmatpush1.bf16.xpose.msra.mxu0 %v1418
    %1436 = vmatprep.subr.bf16.mxu0 0
    %1437 = vmatpush2.bf16.xpose.msra.mxu0 0
    %1438 = vmatprep.subr.bf16.mxu0 0
    %1439 = vmatpush2.bf16.xpose.msra.mxu0 0
    %1440 = vmatprep.subr.bf16.mxu0 0
    %1441 = vmatpush2.bf16.xpose.msra.mxu0 0
    %1442 = vmatprep.subr.bf16.mxu0 0
    %1443 = vmatpush2.bf16.xpose.msra.mxu0 0
    %1444 = vmatprep.subr.bf16.mxu0 0
    %1445 = vmatpush2.bf16.xpose.msra.mxu0 0
    %1446 = vmatprep.subr.bf16.mxu0 0
    %1447 = vmatpush2.bf16.xpose.msra.mxu0 0
    %1448 = vmatprep.subr.bf16.mxu0 0
    %1449 = vmatpush2.bf16.xpose.msra.mxu0 0
    %1450 = vmatprep.subr.bf16.mxu0 0
    %1451 = vmatpush2.bf16.xpose.msra.mxu0 0
    %1452 = vmatprep.mubr.bf16.mxu0 0
    %1453 = vmatmul.mubr.bf16.gmra.mxu0 %v1415
    %v1454 = vpop.f32.mrf.mxu0
    %v1455 = vadd.f32 %v52, %v1454
    %v1456 = vpop.f32.mrf.mxu0
    %v1457 = vpop.f32.mrf.mxu0
    %v1458 = vadd.f32 %v53, %v1457
    %v1459 = vpop.f32.mrf.mxu0
    %1460 = vdwg.mxu0
    %v1461 = vsel %vm175, %v1455, -inf
    %1462 = vmax.xlane.f32.xlu0 %v1461
    %v1463 = vpop.xlane.xlu0 %1462
    %v1464 = vsel %vm175, %v1458, -inf
    %1465 = vmax.xlane.f32.xlu0 %v1464
    %v1466 = vpop.xlane.xlu0 %1465
    %v1467 = vsub.f32 %v1455, %v1463
    %v1468 = vsub.f32 %v1458, %v1466
    %v1469 = vmul.f32 %v1467, 1.442695
    %v1470 = vpow.pop %v1469
    %v1471 = vmul.f32 %v1468, 1.442695
    %v1472 = vpow.pop %v1471
    %v1473 = vsel %vm175, %v1470, 0.0
    %1474 = vadd.xlane.f32.xlu0 %v1473
    %v1475 = vpop.xlane.xlu0 %1474
    %v1476 = vsel %vm175, %v1472, 0.0
    %1477 = vadd.xlane.f32.xlu0 %v1476
    %v1478 = vpop.xlane.xlu0 %1477
    %v1479 = vrcp.pop %v1475
    %v1480 = vrcp.pop %v1478
    %v1481 = vmul.f32 %v1470, %v1479
    %v1482 = vmul.f32 %v1472, %v1480
    %v1483 = vpack.c.bf16 %v1482, %v1481
    %1484 = vrot.lane.b32.xlu0 %v1047, 40
    %v1485 = vpop.permute.xlu0 %1484
    %v1488 = vsel %vm175, %v1483, 0
    %1490 = vmatprep.subr.bf16.mxu0 0
    %1491 = vmatpush1.bf16.msra.mxu0 0
    %1492 = vmatprep.subr.bf16.mxu0 0
    %1493 = vmatpush1.bf16.msra.mxu0 0
    %1494 = vmatprep.subr.bf16.mxu0 0
    %1495 = vmatpush1.bf16.msra.mxu0 0
    %1496 = vmatprep.subr.bf16.mxu0 0
    %1497 = vmatpush1.bf16.msra.mxu0 0
    %1498 = vmatprep.subr.bf16.mxu0 0
    %1499 = vmatpush1.bf16.msra.mxu0 0
    %1500 = vmatprep.subr.bf16.mxu0 0
    %1501 = vmatpush1.bf16.msra.mxu0 0
    %1502 = vmatprep.subr.bf16.mxu0 0
    %1503 = vmatpush1.bf16.msra.mxu0 0
    %1504 = vmatprep.subr.bf16.mxu0 0
    %1505 = vmatpush1.bf16.msra.mxu0 %v1485
    %1506 = vmatprep.subr.bf16.mxu0 0
    %1507 = vmatpush2.bf16.msra.mxu0 0
    %1508 = vmatprep.subr.bf16.mxu0 0
    %1509 = vmatpush2.bf16.msra.mxu0 0
    %1510 = vmatprep.subr.bf16.mxu0 0
    %1511 = vmatpush2.bf16.msra.mxu0 0
    %1512 = vmatprep.subr.bf16.mxu0 0
    %1513 = vmatpush2.bf16.msra.mxu0 0
    %1514 = vmatprep.subr.bf16.mxu0 0
    %1515 = vmatpush2.bf16.msra.mxu0 0
    %1516 = vmatprep.subr.bf16.mxu0 0
    %1517 = vmatpush2.bf16.msra.mxu0 0
    %1518 = vmatprep.subr.bf16.mxu0 0
    %1519 = vmatpush2.bf16.msra.mxu0 0
    %1520 = vmatprep.subr.bf16.mxu0 0
    %1521 = vmatpush2.bf16.msra.mxu0 0
    %1522 = vmatprep.mubr.bf16.mxu0 0
    %1523 = vmatmul.mubr.bf16.gmra.mxu0 %v1488
    %v1524 = vpop.f32.mrf.mxu0
    %v1525 = vadd.f32 0.0, %v1524
    %v1526 = vpop.f32.mrf.mxu0
    %v1527 = vpop.f32.mrf.mxu0
    %v1528 = vadd.f32 0.0, %v1527
    %v1529 = vpop.f32.mrf.mxu0
    %1530 = vdwg.mxu0
    %1533 = vrot.lane.b32.xlu0 %v1283, 8
    %v1534 = vpop.permute.xlu0 %1533
    %1535 = vrot.lane.b32.xlu0 %v1286, 8
    %v1536 = vpop.permute.xlu0 %1535
    %1541 = vrot.lane.b32.xlu0 %v1404, 16
    %v1542 = vpop.permute.xlu0 %1541
    %1543 = vrot.lane.b32.xlu0 %v1407, 16
    %v1544 = vpop.permute.xlu0 %1543
    %1549 = vrot.lane.b32.xlu0 %v1525, 24
    %v1550 = vpop.permute.xlu0 %1549
    %1551 = vrot.lane.b32.xlu0 %v1528, 24
    %v1552 = vpop.permute.xlu0 %1551
    %v1555 = vsel %vm127, %v1162, %v1534
    %v1556 = vsel %vm127, %v1165, %v1536
    %v1557 = vsel %vm175, %v1555, %v1542
    %v1558 = vsel %vm175, %v1556, %v1544
    %v1559 = vsel %vm637, %v1557, %v1550
    %v1560 = vsel %vm637, %v1558, %v1552
    %v1561 = vpack.c.bf16 %v1560, %v1559
    %s1562 = scalar_lea.vmem %s4, 16
    %v1563 = vld [vmem:[%s1562] sm:$0xf]
    %v1564 = vld [vmem:[%s1562 + $0x4] sm:$0xf]
    %v1565 = vld [vmem:[%s1562 + $0x8] sm:$0xf]
    %v1566 = vld [vmem:[%s1562 + $0xc] sm:$0xf]
    %v1567 = vlaneseq
    %v1568 = vshrl.u32 %v1567, 7
    %v1569 = vsub.s32 1, %v1568
    %v1570 = vrot.slane %v980, %v1569
    %v1575 = vunpack.c.l.b16 %v1563
    %v1576 = vunpack.c.l.b16 %v1564
    %v1577 = vunpack.c.l.b16 %v1565
    %v1578 = vunpack.c.l.b16 %v1566
    %v1579 = vpack.c.b16 %v1576, %v1575
    %v1580 = vpack.c.b16 %v1578, %v1577
    %v1584 = vsel %vm78, %v1561, 0
    %1586 = vmatprep.subr.bf16.mxu0 0
    %1587 = vmatpush1.bf16.msra.mxu0 0
    %1588 = vmatprep.subr.bf16.mxu0 0
    %1589 = vmatpush1.bf16.msra.mxu0 0
    %1590 = vmatprep.subr.bf16.mxu0 0
    %1591 = vmatpush1.bf16.msra.mxu0 0
    %1592 = vmatprep.subr.bf16.mxu0 0
    %1593 = vmatpush1.bf16.msra.mxu0 0
    %1594 = vmatprep.subr.bf16.mxu0 0
    %1595 = vmatpush1.bf16.msra.mxu0 0
    %1596 = vmatprep.subr.bf16.mxu0 0
    %1597 = vmatpush1.bf16.msra.mxu0 0
    %1598 = vmatprep.subr.bf16.mxu0 0
    %1599 = vmatpush1.bf16.msra.mxu0 %v1580
    %1600 = vmatprep.subr.bf16.mxu0 0
    %1601 = vmatpush1.bf16.msra.mxu0 %v1579
    %1602 = vmatprep.subr.bf16.mxu0 0
    %1603 = vmatpush2.bf16.msra.mxu0 0
    %1604 = vmatprep.subr.bf16.mxu0 0
    %1605 = vmatpush2.bf16.msra.mxu0 0
    %1606 = vmatprep.subr.bf16.mxu0 0
    %1607 = vmatpush2.bf16.msra.mxu0 0
    %1608 = vmatprep.subr.bf16.mxu0 0
    %1609 = vmatpush2.bf16.msra.mxu0 0
    %1610 = vmatprep.subr.bf16.mxu0 0
    %1611 = vmatpush2.bf16.msra.mxu0 0
    %1612 = vmatprep.subr.bf16.mxu0 0
    %1613 = vmatpush2.bf16.msra.mxu0 0
    %1614 = vmatprep.subr.bf16.mxu0 0
    %1615 = vmatpush2.bf16.msra.mxu0 0
    %1616 = vmatprep.subr.bf16.mxu0 0
    %1617 = vmatpush2.bf16.msra.mxu0 0
    %1618 = vmatprep.mubr.bf16.mxu0 0
    %1619 = vmatmul.mubr.bf16.gmra.mxu0 %v1584
    %v1620 = vpop.f32.mrf.mxu0
    %v1621 = vadd.f32 %v1570, %v1620
    %v1622 = vpop.f32.mrf.mxu0
    %v1623 = vpop.f32.mrf.mxu0
    %v1624 = vadd.f32 %v1570, %v1623
    %v1625 = vpop.f32.mrf.mxu0
    %1626 = vdwg.mxu0
    %v1627 = vadd.f32 %v977, %v1621
    %v1628 = vadd.f32 %v978, %v1624
    %v1629 = vsel %vm78, %v1627, 0.0
    %1630 = vadd.xlane.f32.xlu0 %v1629
    %v1631 = vpop.xlane.xlu0 %1630
    %v1632 = vsel %vm78, %v1628, 0.0
    %1633 = vadd.xlane.f32.xlu0 %v1632
    %v1634 = vpop.xlane.xlu0 %1633
    %v1635 = vmul.f32 %v1631, %v713
    %v1636 = vmul.f32 %v1634, %v713
    %v1637 = vsub.f32 %v1627, %v1635
    %v1638 = vsub.f32 %v1628, %v1636
    %v1639 = vmul.f32 %v1637, %v1637
    %v1640 = vmul.f32 %v1638, %v1638
    %v1641 = vsel %vm78, %v1639, 0.0
    %1642 = vadd.xlane.f32.xlu0 %v1641
    %v1643 = vpop.xlane.xlu0 %1642
    %v1644 = vsel %vm78, %v1640, 0.0
    %1645 = vadd.xlane.f32.xlu0 %v1644
    %v1646 = vpop.xlane.xlu0 %1645
    %v1647 = vmul.f32 %v1643, %v713
    %v1648 = vmul.f32 %v1646, %v713
    %v1649 = vadd.f32 %v1647, 1e-12
    %v1650 = vadd.f32 %v1648, 1e-12
    %v1651 = vrsqrt.pop %v1649
    %v1652 = vrsqrt.pop %v1650
    %v1653 = vmul.f32 %v1637, %v1651
    %v1654 = vmul.f32 %v1638, %v1652
    %v1655 = vlaneseq
    %v1656 = vshrl.u32 %v1655, 7
    %v1657 = vsub.s32 2, %v1656
    %v1658 = vrot.slane %v980, %v1657
    %v1659 = vmul.f32 %v1653, %v1658
    %v1660 = vmul.f32 %v1654, %v1658
    %v1661 = vlaneseq
    %v1662 = vshrl.u32 %v1661, 7
    %v1663 = vsub.s32 3, %v1662
    %v1664 = vrot.slane %v980, %v1663
    %v1665 = vadd.f32 %v1659, %v1664
    %v1666 = vadd.f32 %v1660, %v1664
    %v1667 = vpack.c.bf16 %v1666, %v1665
    %s1668 = scalar_lea.vmem %s5, 16
    %v1669 = vld [vmem:[%s1668] sm:$0xf]
    %v1670 = vld [vmem:[%s1668 + $0x4] sm:$0xf]
    %v1671 = vld [vmem:[%s1668 + $0x8] sm:$0xf]
    %v1672 = vld [vmem:[%s1668 + $0xc] sm:$0xf]
    %v1673 = vlaneseq
    %v1674 = vshrl.u32 %v1673, 7
    %v1675 = vsub.s32 4, %v1674
    %v1676 = vrot.slane %v980, %v1675
    %v1681 = vunpack.c.l.b16 %v1669
    %v1682 = vunpack.c.l.b16 %v1670
    %v1683 = vunpack.c.l.b16 %v1671
    %v1684 = vunpack.c.l.b16 %v1672
    %v1685 = vpack.c.b16 %v1682, %v1681
    %v1686 = vpack.c.b16 %v1684, %v1683
    %v1690 = vsel %vm78, %v1667, 0
    %1692 = vmatprep.subr.bf16.mxu0 0
    %1693 = vmatpush1.bf16.msra.mxu0 0
    %1694 = vmatprep.subr.bf16.mxu0 0
    %1695 = vmatpush1.bf16.msra.mxu0 0
    %1696 = vmatprep.subr.bf16.mxu0 0
    %1697 = vmatpush1.bf16.msra.mxu0 0
    %1698 = vmatprep.subr.bf16.mxu0 0
    %1699 = vmatpush1.bf16.msra.mxu0 0
    %1700 = vmatprep.subr.bf16.mxu0 0
    %1701 = vmatpush1.bf16.msra.mxu0 0
    %1702 = vmatprep.subr.bf16.mxu0 0
    %1703 = vmatpush1.bf16.msra.mxu0 0
    %1704 = vmatprep.subr.bf16.mxu0 0
    %1705 = vmatpush1.bf16.msra.mxu0 %v1686
    %1706 = vmatprep.subr.bf16.mxu0 0
    %1707 = vmatpush1.bf16.msra.mxu0 %v1685
    %1708 = vmatprep.subr.bf16.mxu0 0
    %1709 = vmatpush2.bf16.msra.mxu0 0
    %1710 = vmatprep.subr.bf16.mxu0 0
    %1711 = vmatpush2.bf16.msra.mxu0 0
    %1712 = vmatprep.subr.bf16.mxu0 0
    %1713 = vmatpush2.bf16.msra.mxu0 0
    %1714 = vmatprep.subr.bf16.mxu0 0
    %1715 = vmatpush2.bf16.msra.mxu0 0
    %1716 = vmatprep.subr.bf16.mxu0 0
    %1717 = vmatpush2.bf16.msra.mxu0 0
    %1718 = vmatprep.subr.bf16.mxu0 0
    %1719 = vmatpush2.bf16.msra.mxu0 0
    %1720 = vmatprep.subr.bf16.mxu0 0
    %1721 = vmatpush2.bf16.msra.mxu0 0
    %1722 = vmatprep.subr.bf16.mxu0 0
    %1723 = vmatpush2.bf16.msra.mxu0 0
    %1724 = vmatprep.mubr.bf16.mxu0 0
    %1725 = vmatmul.mubr.bf16.gmra.mxu0 %v1690
    %v1726 = vpop.f32.mrf.mxu0
    %v1727 = vadd.f32 %v1676, %v1726
    %v1728 = vpop.f32.mrf.mxu0
    %v1729 = vpop.f32.mrf.mxu0
    %v1730 = vadd.f32 %v1676, %v1729
    %v1731 = vpop.f32.mrf.mxu0
    %1732 = vdwg.mxu0
    %v1733 = vmul.f32 %v1727, 0.5
    %v1734 = vmul.f32 %v1730, 0.5
    %v1735 = vmul.f32 %v1727, 0.044715
    %v1736 = vmul.f32 %v1730, 0.044715
    %v1737 = vmul.f32 %v1735, %v1727
    %v1738 = vmul.f32 %v1736, %v1730
    %v1739 = vmul.f32 %v1737, %v1727
    %v1740 = vmul.f32 %v1738, %v1730
    %v1741 = vadd.f32 %v1727, %v1739
    %v1742 = vadd.f32 %v1730, %v1740
    %v1743 = vmul.f32 %v1741, 0.7978846
    %v1744 = vmul.f32 %v1742, 0.7978846
    %v1745 = vtanh.pop %v1743
    %v1746 = vtanh.pop %v1744
    %v1747 = vadd.f32 %v1745, 1.0
    %v1748 = vadd.f32 %v1746, 1.0
    %v1749 = vmul.f32 %v1733, %v1747
    %v1750 = vmul.f32 %v1734, %v1748
    %v1751 = vpack.c.bf16 %v1750, %v1749
    %s1752 = scalar_lea.vmem %s6, 64
    %v1753 = vld [vmem:[%s1752] sm:$0xf]
    %v1754 = vld [vmem:[%s1752 + $0x4] sm:$0xf]
    %v1755 = vld [vmem:[%s1752 + $0x8] sm:$0xf]
    %v1756 = vld [vmem:[%s1752 + $0xc] sm:$0xf]
    %v1757 = vld [vmem:[%s1752 + $0x10] sm:$0xf]
    %v1758 = vld [vmem:[%s1752 + $0x14] sm:$0xf]
    %v1759 = vld [vmem:[%s1752 + $0x18] sm:$0xf]
    %v1760 = vld [vmem:[%s1752 + $0x1c] sm:$0xf]
    %v1761 = vld [vmem:[%s1752 + $0x20] sm:$0xf]
    %v1762 = vld [vmem:[%s1752 + $0x24] sm:$0xf]
    %v1763 = vld [vmem:[%s1752 + $0x28] sm:$0xf]
    %v1764 = vld [vmem:[%s1752 + $0x2c] sm:$0xf]
    %v1765 = vld [vmem:[%s1752 + $0x30] sm:$0xf]
    %v1766 = vld [vmem:[%s1752 + $0x34] sm:$0xf]
    %v1767 = vld [vmem:[%s1752 + $0x38] sm:$0xf]
    %v1768 = vld [vmem:[%s1752 + $0x3c] sm:$0xf]
    %v1769 = vlaneseq
    %v1770 = vshrl.u32 %v1769, 7
    %v1771 = vsub.s32 5, %v1770
    %v1772 = vrot.slane %v980, %v1771
    %v1789 = vunpack.c.l.b16 %v1753
    %v1790 = vunpack.c.l.b16 %v1754
    %v1791 = vunpack.c.l.b16 %v1755
    %v1792 = vunpack.c.l.b16 %v1756
    %v1793 = vunpack.c.l.b16 %v1757
    %v1794 = vunpack.c.l.b16 %v1758
    %v1795 = vunpack.c.l.b16 %v1759
    %v1796 = vunpack.c.l.b16 %v1760
    %v1797 = vunpack.c.l.b16 %v1761
    %v1798 = vunpack.c.l.b16 %v1762
    %v1799 = vunpack.c.l.b16 %v1763
    %v1800 = vunpack.c.l.b16 %v1764
    %v1801 = vunpack.c.l.b16 %v1765
    %v1802 = vunpack.c.l.b16 %v1766
    %v1803 = vunpack.c.l.b16 %v1767
    %v1804 = vunpack.c.l.b16 %v1768
    %v1805 = vpack.c.b16 %v1790, %v1789
    %v1806 = vpack.c.b16 %v1792, %v1791
    %v1807 = vpack.c.b16 %v1794, %v1793
    %v1808 = vpack.c.b16 %v1796, %v1795
    %v1809 = vpack.c.b16 %v1798, %v1797
    %v1810 = vpack.c.b16 %v1800, %v1799
    %v1811 = vpack.c.b16 %v1802, %v1801
    %v1812 = vpack.c.b16 %v1804, %v1803
    %1821 = vmatprep.subr.bf16.mxu0 0
    %1822 = vmatpush1.bf16.msra.mxu0 %v1812
    %1823 = vmatprep.subr.bf16.mxu0 0
    %1824 = vmatpush1.bf16.msra.mxu0 %v1811
    %1825 = vmatprep.subr.bf16.mxu0 0
    %1826 = vmatpush1.bf16.msra.mxu0 %v1810
    %1827 = vmatprep.subr.bf16.mxu0 0
    %1828 = vmatpush1.bf16.msra.mxu0 %v1809
    %1829 = vmatprep.subr.bf16.mxu0 0
    %1830 = vmatpush1.bf16.msra.mxu0 %v1808
    %1831 = vmatprep.subr.bf16.mxu0 0
    %1832 = vmatpush1.bf16.msra.mxu0 %v1807
    %1833 = vmatprep.subr.bf16.mxu0 0
    %1834 = vmatpush1.bf16.msra.mxu0 %v1806
    %1835 = vmatprep.subr.bf16.mxu0 0
    %1836 = vmatpush1.bf16.msra.mxu0 %v1805
    %1837 = vmatprep.subr.bf16.mxu0 0
    %1838 = vmatpush2.bf16.msra.mxu0 0
    %1839 = vmatprep.subr.bf16.mxu0 0
    %1840 = vmatpush2.bf16.msra.mxu0 0
    %1841 = vmatprep.subr.bf16.mxu0 0
    %1842 = vmatpush2.bf16.msra.mxu0 0
    %1843 = vmatprep.subr.bf16.mxu0 0
    %1844 = vmatpush2.bf16.msra.mxu0 0
    %1845 = vmatprep.subr.bf16.mxu0 0
    %1846 = vmatpush2.bf16.msra.mxu0 0
    %1847 = vmatprep.subr.bf16.mxu0 0
    %1848 = vmatpush2.bf16.msra.mxu0 0
    %1849 = vmatprep.subr.bf16.mxu0 0
    %1850 = vmatpush2.bf16.msra.mxu0 0
    %1851 = vmatprep.subr.bf16.mxu0 0
    %1852 = vmatpush2.bf16.msra.mxu0 0
    %1853 = vmatprep.mubr.bf16.mxu0 0
    %1854 = vmatmul.mubr.bf16.gmra.mxu0 %v1751
    %v1855 = vpop.f32.mrf.mxu0
    %v1856 = vadd.f32 %v1772, %v1855
    %v1857 = vpop.f32.mrf.mxu0
    %v1858 = vpop.f32.mrf.mxu0
    %v1859 = vadd.f32 %v1772, %v1858
    %v1860 = vpop.f32.mrf.mxu0
    %1861 = vdwg.mxu0
    %v1862 = vadd.f32 %v1665, %v1856
    %v1863 = vadd.f32 %v1666, %v1859
    %v1864 = vsel %vm78, %v1862, 0.0
    %1865 = vadd.xlane.f32.xlu0 %v1864
    %v1866 = vpop.xlane.xlu0 %1865
    %v1867 = vsel %vm78, %v1863, 0.0
    %1868 = vadd.xlane.f32.xlu0 %v1867
    %v1869 = vpop.xlane.xlu0 %1868
    %v1870 = vmul.f32 %v1866, %v713
    %v1871 = vmul.f32 %v1869, %v713
    %v1872 = vsub.f32 %v1862, %v1870
    %v1873 = vsub.f32 %v1863, %v1871
    %v1874 = vmul.f32 %v1872, %v1872
    %v1875 = vmul.f32 %v1873, %v1873
    %v1876 = vsel %vm78, %v1874, 0.0
    %1877 = vadd.xlane.f32.xlu0 %v1876
    %v1878 = vpop.xlane.xlu0 %1877
    %v1879 = vsel %vm78, %v1875, 0.0
    %1880 = vadd.xlane.f32.xlu0 %v1879
    %v1881 = vpop.xlane.xlu0 %1880
    %v1882 = vmul.f32 %v1878, %v713
    %v1883 = vmul.f32 %v1881, %v713
    %v1884 = vadd.f32 %v1882, 1e-12
    %v1885 = vadd.f32 %v1883, 1e-12
    %v1886 = vrsqrt.pop %v1884
    %v1887 = vrsqrt.pop %v1885
    %v1888 = vmul.f32 %v1872, %v1886
    %v1889 = vmul.f32 %v1873, %v1887
    %v1890 = vlaneseq
    %v1891 = vshrl.u32 %v1890, 7
    %v1892 = vsub.s32 6, %v1891
    %v1893 = vrot.slane %v980, %v1892
    %v1894 = vmul.f32 %v1888, %v1893
    %v1895 = vmul.f32 %v1889, %v1893
    %v1896 = vlaneseq
    %v1897 = vshrl.u32 %v1896, 7
    %v1898 = vsub.s32 7, %v1897
    %v1899 = vrot.slane %v980, %v1898
    %v1900 = vadd.f32 %v1894, %v1899
    %v1901 = vadd.f32 %v1895, %v1899
    %1902 = vst.msk [vmem:[#allocation2] sm:$0xff] %vm78, %v1900
    %1903 = vst.msk [vmem:[#allocation2 + $0x8] sm:$0xff] %vm78, %v1901
    %v1904 = vld [vmem:[#allocation2] ss:$8 sm:$0x3]
    %v1905 = vld [vmem:[%s10] sm:$0x3]
    %v1906 = vpack.c.bf16 %v1904, %v1904
    %v1907 = vld [vmem:[%s8] sm:$0xf]
    %v1908 = vld [vmem:[%s8 + $0x4] sm:$0xf]
    %v1909 = vld [vmem:[%s8 + $0x8] sm:$0xf]
    %v1910 = vld [vmem:[%s8 + $0xc] sm:$0xf]
    %v1911 = vlaneseq
    %v1912 = vshrl.u32 %v1911, 7
    %v1913 = vsub.s32 0, %v1912
    %v1914 = vrot.slane %v1905, %v1913
    %v1919 = vunpack.c.l.b16 %v1907
    %v1920 = vunpack.c.l.b16 %v1908
    %v1921 = vunpack.c.l.b16 %v1909
    %v1922 = vunpack.c.l.b16 %v1910
    %v1923 = vpack.c.b16 %v1920, %v1919
    %v1924 = vpack.c.b16 %v1922, %v1921
    %v1928 = vsel %vm78, %v1906, 0
    %1930 = vmatprep.subr.bf16.mxu0 0
    %1931 = vmatpush1.bf16.msra.mxu0 0
    %1932 = vmatprep.subr.bf16.mxu0 0
    %1933 = vmatpush1.bf16.msra.mxu0 0
    %1934 = vmatprep.subr.bf16.mxu0 0
    %1935 = vmatpush1.bf16.msra.mxu0 0
    %1936 = vmatprep.subr.bf16.mxu0 0
    %1937 = vmatpush1.bf16.msra.mxu0 0
    %1938 = vmatprep.subr.bf16.mxu0 0
    %1939 = vmatpush1.bf16.msra.mxu0 0
    %1940 = vmatprep.subr.bf16.mxu0 0
    %1941 = vmatpush1.bf16.msra.mxu0 0
    %1942 = vmatprep.subr.bf16.mxu0 0
    %1943 = vmatpush1.bf16.msra.mxu0 %v1924
    %1944 = vmatprep.subr.bf16.mxu0 0
    %1945 = vmatpush1.bf16.msra.mxu0 %v1923
    %1946 = vmatprep.subr.bf16.mxu0 0
    %1947 = vmatpush2.bf16.msra.mxu0 0
    %1948 = vmatprep.subr.bf16.mxu0 0
    %1949 = vmatpush2.bf16.msra.mxu0 0
    %1950 = vmatprep.subr.bf16.mxu0 0
    %1951 = vmatpush2.bf16.msra.mxu0 0
    %1952 = vmatprep.subr.bf16.mxu0 0
    %1953 = vmatpush2.bf16.msra.mxu0 0
    %1954 = vmatprep.subr.bf16.mxu0 0
    %1955 = vmatpush2.bf16.msra.mxu0 0
    %1956 = vmatprep.subr.bf16.mxu0 0
    %1957 = vmatpush2.bf16.msra.mxu0 0
    %1958 = vmatprep.subr.bf16.mxu0 0
    %1959 = vmatpush2.bf16.msra.mxu0 0
    %1960 = vmatprep.subr.bf16.mxu0 0
    %1961 = vmatpush2.bf16.msra.mxu0 0
    %1962 = vmatprep.mubr.bf16.mxu0 0
    %1963 = vmatmul.mubr.bf16.gmra.mxu0 %v1928
    %v1964 = vpop.f32.mrf.mxu0
    %v1965 = vadd.f32 %v1914, %v1964
    %v1966 = vpop.f32.mrf.mxu0
    %v1967 = vpop.f32.mrf.mxu0
    %v1968 = vpop.f32.mrf.mxu0
    %1969 = vdwg.mxu0
    %v1970 = vtanh.pop %v1965
    %v1971 = vld [vmem:[#allocation3] sm:$0x3]
    %v1972 = vmul.f32 %v1970, %v1971
    %v1973 = vpack.c.bf16 %v1972, %v1972
    %v1974 = vld [vmem:[%s9] sm:$0xf]
    %v1975 = vld [vmem:[%s9 + $0x4] sm:$0xf]
    %v1976 = vld [vmem:[%s9 + $0x8] sm:$0xf]
    %v1977 = vld [vmem:[%s9 + $0xc] sm:$0xf]
    %v1978 = vlaneseq
    %v1979 = vshrl.u32 %v1978, 7
    %v1980 = vsub.s32 1, %v1979
    %v1981 = vrot.slane %v1905, %v1980
    %v1986 = vunpack.c.l.b16 %v1974
    %v1987 = vunpack.c.l.b16 %v1975
    %v1988 = vunpack.c.l.b16 %v1976
    %v1989 = vunpack.c.l.b16 %v1977
    %v1990 = vpack.c.b16 %v1987, %v1986
    %v1991 = vpack.c.b16 %v1989, %v1988
    %v1995 = vsel %vm78, %v1973, 0
    %1997 = vmatprep.subr.bf16.mxu0 0
    %1998 = vmatpush1.bf16.msra.mxu0 0
    %1999 = vmatprep.subr.bf16.mxu0 0
    %2000 = vmatpush1.bf16.msra.mxu0 0
    %2001 = vmatprep.subr.bf16.mxu0 0
    %2002 = vmatpush1.bf16.msra.mxu0 0
    %2003 = vmatprep.subr.bf16.mxu0 0
    %2004 = vmatpush1.bf16.msra.mxu0 0
    %2005 = vmatprep.subr.bf16.mxu0 0
    %2006 = vmatpush1.bf16.msra.mxu0 0
    %2007 = vmatprep.subr.bf16.mxu0 0
    %2008 = vmatpush1.bf16.msra.mxu0 0
    %2009 = vmatprep.subr.bf16.mxu0 0
    %2010 = vmatpush1.bf16.msra.mxu0 %v1991
    %2011 = vmatprep.subr.bf16.mxu0 0
    %2012 = vmatpush1.bf16.msra.mxu0 %v1990
    %2013 = vmatprep.subr.bf16.mxu0 0
    %2014 = vmatpush2.bf16.msra.mxu0 0
    %2015 = vmatprep.subr.bf16.mxu0 0
    %2016 = vmatpush2.bf16.msra.mxu0 0
    %2017 = vmatprep.subr.bf16.mxu0 0
    %2018 = vmatpush2.bf16.msra.mxu0 0
    %2019 = vmatprep.subr.bf16.mxu0 0
    %2020 = vmatpush2.bf16.msra.mxu0 0
    %2021 = vmatprep.subr.bf16.mxu0 0
    %2022 = vmatpush2.bf16.msra.mxu0 0
    %2023 = vmatprep.subr.bf16.mxu0 0
    %2024 = vmatpush2.bf16.msra.mxu0 0
    %2025 = vmatprep.subr.bf16.mxu0 0
    %2026 = vmatpush2.bf16.msra.mxu0 0
    %2027 = vmatprep.subr.bf16.mxu0 0
    %2028 = vmatpush2.bf16.msra.mxu0 0
    %2029 = vmatprep.mubr.bf16.mxu0 0
    %2030 = vmatmul.mubr.bf16.gmra.mxu0 %v1995
    %v2031 = vpop.f32.mrf.mxu0
    %v2032 = vadd.f32 %v1981, %v2031
    %v2033 = vpop.f32.mrf.mxu0
    %v2034 = vpop.f32.mrf.mxu0
    %v2035 = vpop.f32.mrf.mxu0
    %2036 = vdwg.mxu0
    %2037 = vst [vmem:[#allocation6] sm:$0x3] %v2032
    // Predicated region
    $region50: #{tpu_custom_call.1} parent=1 // pred_check
      _
    $region51: #{tpu_custom_call.1} parent=1 // pred_check_branch
      %2039 = sbr.rel (0) target = $region53
    $region52: #{tpu_custom_call.1} parent=1 // pred_region
      %s2041 = ssub.s32 32, 32
      %2042 = vsyncadd [#allocation5], %s2041
      %s2044 = sshll.u32 [#allocation6], 4
      %s2045 = int_to_ptr.vmem [resolvable:$true] %s2044
      %2047 = dma.vmem_to_hbm [thread:$0]  %s2045, 32, %s11, [#allocation5]
    $region53: #{tpu_custom_call.1} parent=1 // pred_fallthru
      _
    // Predicated region
    $region54: #{tpu_custom_call.1} parent=1 // pred_check
      _
    $region55: #{tpu_custom_call.1} parent=1 // pred_check_branch
      %2049 = sbr.rel (0) target = $region57
    $region56: #{tpu_custom_call.1} parent=1 // pred_region
      %2050 = dma.done [#allocation5], 32
    $region57: #{tpu_custom_call.1} parent=1 // pred_fallthru
      _
    %2051 = vsyncpa [#allocation4], 1
    %2052 = vsyncpa [#allocation5], 1

</llo_original>
